<compile_context>
chip_gen: v6e
topology: v6e:2x2x1
jax: 0.10.0
libtpu: 0.0.40
codegen_flags: <defaults>
</compile_context>

<pallas_src>
import jax
import jax.numpy as jnp
from jax.experimental import pallas as pl
from jax.experimental.pallas import tpu as pltpu

# Model hyper-parameters (small, consistent with the module's implied config).
D_MODEL = 32
N_HEADS = 4
HEAD_DIM = D_MODEL // N_HEADS
B = 2
L = 8


def _attention_kernel(x_ref, wqkv_ref, bqkv_ref, wproj_ref, bproj_ref, o_ref):
    # x_ref:     (B*L, D)   all rows of all batch elements
    # wqkv_ref:  (D, 3D)    c_attn weight (transposed); Q columns pre-scaled
    # bqkv_ref:  (1, 3D)    c_attn bias; Q part pre-scaled
    # wproj_ref: (D, D)     c_proj weight (transposed)
    # bproj_ref: (1, D)     c_proj bias
    # o_ref:     (B*L, D)   output
    bl, d = x_ref.shape
    b = bl // L

    x = x_ref[...]                                              # (B*L, D)

    # Fused QKV projection: a single MXU pass over all B*L rows.
    qkv = jnp.dot(x, wqkv_ref[...], preferred_element_type=jnp.float32)
    qkv = qkv + bqkv_ref[...]                                   # (B*L, 3D)

    # Leading-dim split only (layout-trivial): (B*L, D) -> (B, L, D).
    q = qkv[:, 0 * D_MODEL:1 * D_MODEL].reshape(b, L, D_MODEL)
    k = qkv[:, 1 * D_MODEL:2 * D_MODEL].reshape(b, L, D_MODEL)
    v = qkv[:, 2 * D_MODEL:3 * D_MODEL].reshape(b, L, D_MODEL)

    wp = wproj_ref[...]                                         # (D, D), hoisted

    # Accumulate each head's contribution directly through the output
    # projection:  y @ W_proj + b == b + sum_h  y_h @ W_proj[h*dh:(h+1)*dh, :]
    # (removes the cross-lane concatenate entirely). Start from the bias.
    acc = jnp.broadcast_to(bproj_ref[...], (bl, d)).astype(jnp.float32)
    for h in range(N_HEADS):                                    # static unroll
        lo = h * HEAD_DIM
        hi = lo + HEAD_DIM
        qh = q[:, :, lo:hi]                                     # (B, L, dh)
        kh = k[:, :, lo:hi]                                     # (B, L, dh)
        vh = v[:, :, lo:hi]                                     # (B, L, dh)

        # Scores (softmax scale already folded into Q); contract the shared
        # head dim directly -- no materialized transpose of K.
        s = jnp.einsum('bqd,bkd->bqk', qh, kh,
                       preferred_element_type=jnp.float32)      # (B, L, L)

        # Numerically-stable softmax; normalization deferred to after the
        # PV matmul (fewer elements to scale).
        m = jnp.max(s, axis=-1, keepdims=True)
        p = jnp.exp(s - m)
        denom = jnp.sum(p, axis=-1, keepdims=True)              # (B, L, 1)

        yh = jnp.einsum('bqk,bkd->bqd', p, vh,
                        preferred_element_type=jnp.float32)     # (B, L, dh)
        yh = yh * pl.reciprocal(denom, approx=False)

        # W_proj row slice is sublane-aligned (lo is a multiple of 8).
        acc = acc + jnp.dot(yh.reshape(bl, HEAD_DIM), wp[lo:hi, :],
                            preferred_element_type=jnp.float32)

    o_ref[...] = acc.astype(o_ref.dtype)


def attention_forward(x, w_qkv, b_qkv, w_proj, b_proj):
    """x: (B, L, D) float32.  Weights pre-transposed to (in, out):
    w_qkv (D, 3D), b_qkv (3D,), w_proj (D, D), b_proj (D,)."""
    Bn, Ln, Dn = x.shape
    scale = 1.0 / (HEAD_DIM ** 0.5)

    # Fold the softmax 1/sqrt(dh) scale into the Q slice of the projection
    # (a one-time constant fold in the wrapper, not a per-call op).
    w_qkv_s = w_qkv.at[:, :Dn].multiply(scale)
    b_qkv_s = b_qkv.at[:Dn].multiply(scale)

    x2 = x.reshape(Bn * Ln, Dn)                 # single 2-D activation slab
    b_qkv2 = b_qkv_s.reshape(1, 3 * Dn)
    b_proj2 = b_proj.reshape(1, Dn)

    vmem = pl.BlockSpec(memory_space=pltpu.MemorySpace.VMEM)
    out2 = pl.pallas_call(
        _attention_kernel,
        out_shape=jax.ShapeDtypeStruct((Bn * Ln, Dn), x.dtype),
        in_specs=[vmem, vmem, vmem, vmem, vmem],   # whole arrays, one step
        out_specs=vmem,
    )(x2, w_qkv_s, b_qkv2, w_proj, b_proj2)

    return out2.reshape(Bn, Ln, Dn)


def attention_reference(x, w_qkv, b_qkv, w_proj, b_proj):
    """Pure-JAX reference mirroring the PyTorch forward exactly (f32 matmuls)."""
    Bn, Ln, Dn = x.shape
    hp = jax.lax.Precision.HIGHEST
    qkv = jnp.dot(x, w_qkv, precision=hp) + b_qkv               # (B, L, 3D)
    q, k, v = jnp.split(qkv, 3, axis=2)

    def heads(t):                                               # (B, H, L, dh)
        return t.reshape(Bn, Ln, N_HEADS, HEAD_DIM).transpose(0, 2, 1, 3)

    q, k, v = heads(q), heads(k), heads(v)
    s = jnp.einsum("bhqd,bhkd->bhqk", q, k, precision=hp) / (HEAD_DIM ** 0.5)
    p = jax.nn.softmax(s, axis=-1)
    y = jnp.einsum("bhqk,bhkd->bhqd", p, v, precision=hp)
    y = y.transpose(0, 2, 1, 3).reshape(Bn, Ln, Dn)
    return jnp.dot(y, w_proj, precision=hp) + b_proj


if __name__ == "__main__":
    key = jax.random.PRNGKey(0)
    kx, k1, k2, k3, k4 = jax.random.split(key, 5)

    # Deterministic parameter init (PyTorch Linear shapes: c_attn (3D, D),
    # c_proj (D, D)); we store the transposed (in, out) versions directly.
    bound_attn = 1.0 / (D_MODEL ** 0.5)
    w_qkv = jax.random.uniform(k1, (D_MODEL, 3 * D_MODEL), jnp.float32,
                               -bound_attn, bound_attn)
    b_qkv = jax.random.uniform(k2, (3 * D_MODEL,), jnp.float32,
                               -bound_attn, bound_attn)
    w_proj = jax.random.uniform(k3, (D_MODEL, D_MODEL), jnp.float32,
                                -bound_attn, bound_attn)
    b_proj = jax.random.uniform(k4, (D_MODEL,), jnp.float32,
                                -bound_attn, bound_attn)

    x = jax.random.normal(kx, (B, L, D_MODEL), jnp.float32)

    out = attention_forward(x, w_qkv, b_qkv, w_proj, b_proj)
    out = jax.block_until_ready(out)

    ref = attention_reference(x, w_qkv, b_qkv, w_proj, b_proj)
    assert out.shape == (B, L, D_MODEL)
    assert jnp.allclose(out, ref, atol=1e-4, rtol=1e-4), "mismatch vs reference"

    print("KERNEL_OK")
</pallas_src>

<mosaic_0001>
module attributes {stable_mosaic.version = 11 : i64} {
  func.func @_attention_kernel(%arg0: memref<16x32xf32, #tpu.memory_space<vmem>>, %arg1: memref<32x96xf32, #tpu.memory_space<vmem>>, %arg2: memref<1x96xf32, #tpu.memory_space<vmem>>, %arg3: memref<32x32xf32, #tpu.memory_space<vmem>>, %arg4: memref<1x32xf32, #tpu.memory_space<vmem>>, %arg5: memref<16x32xf32, #tpu.memory_space<vmem>>) attributes {dimension_semantics = [], scalar_prefetch = 0 : i64, scratch_operands = 0 : i64, tpu.core_type = #tpu.core_type<tc>} {
    %c0 = arith.constant 0 : index
    %c0_0 = arith.constant 0 : index
    %0 = vector.load %arg0[%c0, %c0_0] : memref<16x32xf32, #tpu.memory_space<vmem>>, vector<16x32xf32>
    %c0_1 = arith.constant 0 : index
    %c0_2 = arith.constant 0 : index
    %1 = vector.load %arg1[%c0_1, %c0_2] : memref<32x96xf32, #tpu.memory_space<vmem>>, vector<32x96xf32>
    %cst = arith.constant dense<0.000000e+00> : vector<16x96xf32>
    %2 = tpu.matmul %0, %1, %cst {dimension_numbers = #tpu.dot_dimension_numbers<[1], [0], [0], [1], [0, 0, 1, 1], [], []>} : vector<16x32xf32>, vector<32x96xf32>, vector<16x96xf32> -> vector<16x96xf32>
    %c0_3 = arith.constant 0 : index
    %c0_4 = arith.constant 0 : index
    %3 = vector.load %arg2[%c0_3, %c0_4] : memref<1x96xf32, #tpu.memory_space<vmem>>, vector<1x96xf32>
    %4 = vector.broadcast %3 : vector<1x96xf32> to vector<16x96xf32>
    %5 = arith.addf %2, %4 : vector<16x96xf32>
    %6 = vector.extract_strided_slice %5 {offsets = [0, 0], sizes = [16, 32], strides = [1, 1]} : vector<16x96xf32> to vector<16x32xf32>
    %7 = vector.shape_cast %6 : vector<16x32xf32> to vector<2x8x32xf32>
    %8 = vector.extract_strided_slice %5 {offsets = [0, 32], sizes = [16, 32], strides = [1, 1]} : vector<16x96xf32> to vector<16x32xf32>
    %9 = vector.shape_cast %8 : vector<16x32xf32> to vector<2x8x32xf32>
    %10 = vector.extract_strided_slice %5 {offsets = [0, 64], sizes = [16, 32], strides = [1, 1]} : vector<16x96xf32> to vector<16x32xf32>
    %11 = vector.shape_cast %10 : vector<16x32xf32> to vector<2x8x32xf32>
    %c0_5 = arith.constant 0 : index
    %c0_6 = arith.constant 0 : index
    %12 = vector.load %arg3[%c0_5, %c0_6] : memref<32x32xf32, #tpu.memory_space<vmem>>, vector<32x32xf32>
    %c0_7 = arith.constant 0 : index
    %c0_8 = arith.constant 0 : index
    %13 = vector.load %arg4[%c0_7, %c0_8] : memref<1x32xf32, #tpu.memory_space<vmem>>, vector<1x32xf32>
    %14 = vector.shape_cast %13 : vector<1x32xf32> to vector<1x32xf32>
    %15 = vector.broadcast %14 : vector<1x32xf32> to vector<16x32xf32>
    %16 = vector.extract_strided_slice %7 {offsets = [0, 0, 0], sizes = [2, 8, 8], strides = [1, 1, 1]} : vector<2x8x32xf32> to vector<2x8x8xf32>
    %17 = vector.extract_strided_slice %9 {offsets = [0, 0, 0], sizes = [2, 8, 8], strides = [1, 1, 1]} : vector<2x8x32xf32> to vector<2x8x8xf32>
    %18 = vector.extract_strided_slice %11 {offsets = [0, 0, 0], sizes = [2, 8, 8], strides = [1, 1, 1]} : vector<2x8x32xf32> to vector<2x8x8xf32>
    "tpu.trace_start"() <{level = 10 : i32, message = "bqd,bkd->bqk"}> : () -> ()
    %cst_9 = arith.constant dense<0.000000e+00> : vector<2x8x8xf32>
    %19 = tpu.matmul %16, %17, %cst_9 {dimension_numbers = #tpu.dot_dimension_numbers<[2], [2], [1], [1], [0, 0, 0, 1, 1, 1], [0], [0]>} : vector<2x8x8xf32>, vector<2x8x8xf32>, vector<2x8x8xf32> -> vector<2x8x8xf32>
    "tpu.trace_stop"() : () -> ()
    %cst_10 = arith.constant dense<0xFF800000> : vector<2x8xf32>
    %20 = vector.multi_reduction <maximumf>, %19, %cst_10 [2] : vector<2x8x8xf32> to vector<2x8xf32>
    %21 = vector.shape_cast %20 : vector<2x8xf32> to vector<2x8x1xf32>
    %22 = vector.broadcast %21 : vector<2x8x1xf32> to vector<2x8x8xf32>
    %23 = arith.subf %19, %22 : vector<2x8x8xf32>
    %24 = math.exp %23 : vector<2x8x8xf32>
    %cst_11 = arith.constant dense<0.000000e+00> : vector<2x8xf32>
    %25 = vector.multi_reduction <add>, %24, %cst_11 [2] : vector<2x8x8xf32> to vector<2x8xf32>
    %26 = vector.shape_cast %25 : vector<2x8xf32> to vector<2x8x1xf32>
    "tpu.trace_start"() <{level = 10 : i32, message = "bqk,bkd->bqd"}> : () -> ()
    %cst_12 = arith.constant dense<0.000000e+00> : vector<2x8x8xf32>
    %27 = tpu.matmul %24, %18, %cst_12 {dimension_numbers = #tpu.dot_dimension_numbers<[2], [1], [1], [2], [0, 0, 0, 1, 1, 2], [0], [0]>} : vector<2x8x8xf32>, vector<2x8x8xf32>, vector<2x8x8xf32> -> vector<2x8x8xf32>
    "tpu.trace_stop"() : () -> ()
    %28 = tpu.reciprocal %26 : vector<2x8x1xf32> -> vector<2x8x1xf32>
    %29 = vector.broadcast %28 : vector<2x8x1xf32> to vector<2x8x8xf32>
    %30 = arith.mulf %27, %29 : vector<2x8x8xf32>
    %31 = vector.shape_cast %30 : vector<2x8x8xf32> to vector<16x8xf32>
    %32 = vector.extract_strided_slice %12 {offsets = [0, 0], sizes = [8, 32], strides = [1, 1]} : vector<32x32xf32> to vector<8x32xf32>
    %cst_13 = arith.constant dense<0.000000e+00> : vector<16x32xf32>
    %33 = tpu.matmul %31, %32, %cst_13 {dimension_numbers = #tpu.dot_dimension_numbers<[1], [0], [0], [1], [0, 0, 1, 1], [], []>} : vector<16x8xf32>, vector<8x32xf32>, vector<16x32xf32> -> vector<16x32xf32>
    %34 = arith.addf %15, %33 : vector<16x32xf32>
    %35 = vector.extract_strided_slice %7 {offsets = [0, 0, 8], sizes = [2, 8, 8], strides = [1, 1, 1]} : vector<2x8x32xf32> to vector<2x8x8xf32>
    %36 = vector.extract_strided_slice %9 {offsets = [0, 0, 8], sizes = [2, 8, 8], strides = [1, 1, 1]} : vector<2x8x32xf32> to vector<2x8x8xf32>
    %37 = vector.extract_strided_slice %11 {offsets = [0, 0, 8], sizes = [2, 8, 8], strides = [1, 1, 1]} : vector<2x8x32xf32> to vector<2x8x8xf32>
    "tpu.trace_start"() <{level = 10 : i32, message = "bqd,bkd->bqk"}> : () -> ()
    %cst_14 = arith.constant dense<0.000000e+00> : vector<2x8x8xf32>
    %38 = tpu.matmul %35, %36, %cst_14 {dimension_numbers = #tpu.dot_dimension_numbers<[2], [2], [1], [1], [0, 0, 0, 1, 1, 1], [0], [0]>} : vector<2x8x8xf32>, vector<2x8x8xf32>, vector<2x8x8xf32> -> vector<2x8x8xf32>
    "tpu.trace_stop"() : () -> ()
    %cst_15 = arith.constant dense<0xFF800000> : vector<2x8xf32>
    %39 = vector.multi_reduction <maximumf>, %38, %cst_15 [2] : vector<2x8x8xf32> to vector<2x8xf32>
    %40 = vector.shape_cast %39 : vector<2x8xf32> to vector<2x8x1xf32>
    %41 = vector.broadcast %40 : vector<2x8x1xf32> to vector<2x8x8xf32>
    %42 = arith.subf %38, %41 : vector<2x8x8xf32>
    %43 = math.exp %42 : vector<2x8x8xf32>
    %cst_16 = arith.constant dense<0.000000e+00> : vector<2x8xf32>
    %44 = vector.multi_reduction <add>, %43, %cst_16 [2] : vector<2x8x8xf32> to vector<2x8xf32>
    %45 = vector.shape_cast %44 : vector<2x8xf32> to vector<2x8x1xf32>
    "tpu.trace_start"() <{level = 10 : i32, message = "bqk,bkd->bqd"}> : () -> ()
    %cst_17 = arith.constant dense<0.000000e+00> : vector<2x8x8xf32>
    %46 = tpu.matmul %43, %37, %cst_17 {dimension_numbers = #tpu.dot_dimension_numbers<[2], [1], [1], [2], [0, 0, 0, 1, 1, 2], [0], [0]>} : vector<2x8x8xf32>, vector<2x8x8xf32>, vector<2x8x8xf32> -> vector<2x8x8xf32>
    "tpu.trace_stop"() : () -> ()
    %47 = tpu.reciprocal %45 : vector<2x8x1xf32> -> vector<2x8x1xf32>
    %48 = vector.broadcast %47 : vector<2x8x1xf32> to vector<2x8x8xf32>
    %49 = arith.mulf %46, %48 : vector<2x8x8xf32>
    %50 = vector.shape_cast %49 : vector<2x8x8xf32> to vector<16x8xf32>
    %51 = vector.extract_strided_slice %12 {offsets = [8, 0], sizes = [8, 32], strides = [1, 1]} : vector<32x32xf32> to vector<8x32xf32>
    %cst_18 = arith.constant dense<0.000000e+00> : vector<16x32xf32>
    %52 = tpu.matmul %50, %51, %cst_18 {dimension_numbers = #tpu.dot_dimension_numbers<[1], [0], [0], [1], [0, 0, 1, 1], [], []>} : vector<16x8xf32>, vector<8x32xf32>, vector<16x32xf32> -> vector<16x32xf32>
    %53 = arith.addf %34, %52 : vector<16x32xf32>
    %54 = vector.extract_strided_slice %7 {offsets = [0, 0, 16], sizes = [2, 8, 8], strides = [1, 1, 1]} : vector<2x8x32xf32> to vector<2x8x8xf32>
    %55 = vector.extract_strided_slice %9 {offsets = [0, 0, 16], sizes = [2, 8, 8], strides = [1, 1, 1]} : vector<2x8x32xf32> to vector<2x8x8xf32>
    %56 = vector.extract_strided_slice %11 {offsets = [0, 0, 16], sizes = [2, 8, 8], strides = [1, 1, 1]} : vector<2x8x32xf32> to vector<2x8x8xf32>
    "tpu.trace_start"() <{level = 10 : i32, message = "bqd,bkd->bqk"}> : () -> ()
    %cst_19 = arith.constant dense<0.000000e+00> : vector<2x8x8xf32>
    %57 = tpu.matmul %54, %55, %cst_19 {dimension_numbers = #tpu.dot_dimension_numbers<[2], [2], [1], [1], [0, 0, 0, 1, 1, 1], [0], [0]>} : vector<2x8x8xf32>, vector<2x8x8xf32>, vector<2x8x8xf32> -> vector<2x8x8xf32>
    "tpu.trace_stop"() : () -> ()
    %cst_20 = arith.constant dense<0xFF800000> : vector<2x8xf32>
    %58 = vector.multi_reduction <maximumf>, %57, %cst_20 [2] : vector<2x8x8xf32> to vector<2x8xf32>
    %59 = vector.shape_cast %58 : vector<2x8xf32> to vector<2x8x1xf32>
    %60 = vector.broadcast %59 : vector<2x8x1xf32> to vector<2x8x8xf32>
    %61 = arith.subf %57, %60 : vector<2x8x8xf32>
    %62 = math.exp %61 : vector<2x8x8xf32>
    %cst_21 = arith.constant dense<0.000000e+00> : vector<2x8xf32>
    %63 = vector.multi_reduction <add>, %62, %cst_21 [2] : vector<2x8x8xf32> to vector<2x8xf32>
    %64 = vector.shape_cast %63 : vector<2x8xf32> to vector<2x8x1xf32>
    "tpu.trace_start"() <{level = 10 : i32, message = "bqk,bkd->bqd"}> : () -> ()
    %cst_22 = arith.constant dense<0.000000e+00> : vector<2x8x8xf32>
    %65 = tpu.matmul %62, %56, %cst_22 {dimension_numbers = #tpu.dot_dimension_numbers<[2], [1], [1], [2], [0, 0, 0, 1, 1, 2], [0], [0]>} : vector<2x8x8xf32>, vector<2x8x8xf32>, vector<2x8x8xf32> -> vector<2x8x8xf32>
    "tpu.trace_stop"() : () -> ()
    %66 = tpu.reciprocal %64 : vector<2x8x1xf32> -> vector<2x8x1xf32>
    %67 = vector.broadcast %66 : vector<2x8x1xf32> to vector<2x8x8xf32>
    %68 = arith.mulf %65, %67 : vector<2x8x8xf32>
    %69 = vector.shape_cast %68 : vector<2x8x8xf32> to vector<16x8xf32>
    %70 = vector.extract_strided_slice %12 {offsets = [16, 0], sizes = [8, 32], strides = [1, 1]} : vector<32x32xf32> to vector<8x32xf32>
    %cst_23 = arith.constant dense<0.000000e+00> : vector<16x32xf32>
    %71 = tpu.matmul %69, %70, %cst_23 {dimension_numbers = #tpu.dot_dimension_numbers<[1], [0], [0], [1], [0, 0, 1, 1], [], []>} : vector<16x8xf32>, vector<8x32xf32>, vector<16x32xf32> -> vector<16x32xf32>
    %72 = arith.addf %53, %71 : vector<16x32xf32>
    %73 = vector.extract_strided_slice %7 {offsets = [0, 0, 24], sizes = [2, 8, 8], strides = [1, 1, 1]} : vector<2x8x32xf32> to vector<2x8x8xf32>
    %74 = vector.extract_strided_slice %9 {offsets = [0, 0, 24], sizes = [2, 8, 8], strides = [1, 1, 1]} : vector<2x8x32xf32> to vector<2x8x8xf32>
    %75 = vector.extract_strided_slice %11 {offsets = [0, 0, 24], sizes = [2, 8, 8], strides = [1, 1, 1]} : vector<2x8x32xf32> to vector<2x8x8xf32>
    "tpu.trace_start"() <{level = 10 : i32, message = "bqd,bkd->bqk"}> : () -> ()
    %cst_24 = arith.constant dense<0.000000e+00> : vector<2x8x8xf32>
    %76 = tpu.matmul %73, %74, %cst_24 {dimension_numbers = #tpu.dot_dimension_numbers<[2], [2], [1], [1], [0, 0, 0, 1, 1, 1], [0], [0]>} : vector<2x8x8xf32>, vector<2x8x8xf32>, vector<2x8x8xf32> -> vector<2x8x8xf32>
    "tpu.trace_stop"() : () -> ()
    %cst_25 = arith.constant dense<0xFF800000> : vector<2x8xf32>
    %77 = vector.multi_reduction <maximumf>, %76, %cst_25 [2] : vector<2x8x8xf32> to vector<2x8xf32>
    %78 = vector.shape_cast %77 : vector<2x8xf32> to vector<2x8x1xf32>
    %79 = vector.broadcast %78 : vector<2x8x1xf32> to vector<2x8x8xf32>
    %80 = arith.subf %76, %79 : vector<2x8x8xf32>
    %81 = math.exp %80 : vector<2x8x8xf32>
    %cst_26 = arith.constant dense<0.000000e+00> : vector<2x8xf32>
    %82 = vector.multi_reduction <add>, %81, %cst_26 [2] : vector<2x8x8xf32> to vector<2x8xf32>
    %83 = vector.shape_cast %82 : vector<2x8xf32> to vector<2x8x1xf32>
    "tpu.trace_start"() <{level = 10 : i32, message = "bqk,bkd->bqd"}> : () -> ()
    %cst_27 = arith.constant dense<0.000000e+00> : vector<2x8x8xf32>
    %84 = tpu.matmul %81, %75, %cst_27 {dimension_numbers = #tpu.dot_dimension_numbers<[2], [1], [1], [2], [0, 0, 0, 1, 1, 2], [0], [0]>} : vector<2x8x8xf32>, vector<2x8x8xf32>, vector<2x8x8xf32> -> vector<2x8x8xf32>
    "tpu.trace_stop"() : () -> ()
    %85 = tpu.reciprocal %83 : vector<2x8x1xf32> -> vector<2x8x1xf32>
    %86 = vector.broadcast %85 : vector<2x8x1xf32> to vector<2x8x8xf32>
    %87 = arith.mulf %84, %86 : vector<2x8x8xf32>
    %88 = vector.shape_cast %87 : vector<2x8x8xf32> to vector<16x8xf32>
    %89 = vector.extract_strided_slice %12 {offsets = [24, 0], sizes = [8, 32], strides = [1, 1]} : vector<32x32xf32> to vector<8x32xf32>
    %cst_28 = arith.constant dense<0.000000e+00> : vector<16x32xf32>
    %90 = tpu.matmul %88, %89, %cst_28 {dimension_numbers = #tpu.dot_dimension_numbers<[1], [0], [0], [1], [0, 0, 1, 1], [], []>} : vector<16x8xf32>, vector<8x32xf32>, vector<16x32xf32> -> vector<16x32xf32>
    %91 = arith.addf %72, %90 : vector<16x32xf32>
    %c0_29 = arith.constant 0 : index
    %c0_30 = arith.constant 0 : index
    %92 = vector.load %arg5[%c0_29, %c0_30] : memref<16x32xf32, #tpu.memory_space<vmem>>, vector<16x32xf32>
    tpu.vector_store %arg5[%c0_29, %c0_30], %91 {strides = array<i32>} : memref<16x32xf32, #tpu.memory_space<vmem>>, vector<16x32xf32>,
    return
  }
}

</mosaic_0001>

<llo_original>
// kernel: tpu_custom_call.1
$region0: #{tpu_custom_call.1}
  #allocation0 [shape = 'u32[]', space=smem, size = 0x4, offset = 0x4, fixed_abs, tag = 'smem constant byte address 0x4 - core index']
  #allocation1 [shape = 'u32[144,128]{1,0:T(1,128)}', space=vmem, size = 0x12000, scoped, tag = 'internal scratch']
  %s0 = inlined_call_operand.hbm [shape: f32[16,32], index: 0, kind: input, shape index: {}]
  %s1 = inlined_call_operand.hbm [shape: f32[32,96], index: 1, kind: input, shape index: {}]
  %s2 = inlined_call_operand.vmem [shape: f32[1,96], index: 2, kind: input, shape index: {}]
  %s3 = inlined_call_operand.hbm [shape: f32[32,32], index: 3, kind: input, shape index: {}]
  %s4 = inlined_call_operand.vmem [shape: f32[1,32], index: 4, kind: input, shape index: {}]
  %s5 = inlined_call_operand.hbm [shape: f32[16,32], index: 5, kind: output, shape index: {}]
  %s6 = sld [smem:[#allocation0]]
  $region42: #{tpu_custom_call.1} parent=0
    _
  %s8 = ssub.s32 1, %s6
  %s9 = scalar_select 0, %s8, %s6
  $region1: #{tpu_custom_call.1} parent=0
    #allocation2 [shape = 'u8[8192]{0}', space=vmem, size = 0x2000, scoped, tag = 'input window, operand 0, single buffered']
    #allocation3 [shape = 's32[1]{0}', space=sflag, size = 0x4, scoped, tag = 'scoped memory for tpu_custom_call.1']
    #allocation4 [shape = 's32[1]{0}', space=sflag, size = 0x4, scoped, tag = 'scoped memory for tpu_custom_call.1']
    #allocation5 [shape = 'u8[16384]{0}', space=vmem, size = 0x4000, scoped, tag = 'input window, operand 1, single buffered']
    #allocation6 [shape = 's32[1]{0}', space=sflag, size = 0x4, scoped, tag = 'scoped memory for tpu_custom_call.1']
    #allocation7 [shape = 'u8[16384]{0}', space=vmem, size = 0x4000, scoped, tag = 'input window, operand 3, single buffered']
    #allocation8 [shape = 'u8[8192]{0}', space=vmem, size = 0x2000, scoped, tag = 'output window, operand 0, single buffered']
    %10 = vsyncpa [#allocation3], 0
    %11 = vsyncpa [#allocation6], 0
    %12 = vsyncpa [#allocation4], 0
    // Predicated region
    $region2: #{tpu_custom_call.1} parent=1 // pred_check
      _
    $region3: #{tpu_custom_call.1} parent=1 // pred_check_branch
      %14 = sbr.rel (0) target = $region5
    $region4: #{tpu_custom_call.1} parent=1 // pred_region
      %s16 = ssub.s32 256, 256
      %17 = vsyncadd [#allocation3], %s16
      %s18 = sshll.u32 [#allocation2], 4
      %s19 = int_to_ptr.vmem [resolvable:$true] %s18
      %24 = dma.hbm_to_vmem [thread:$0]  %s0, 256, %s19, [#allocation3], 128, 128, 8
    $region5: #{tpu_custom_call.1} parent=1 // pred_fallthru
      _
    // Predicated region
    $region6: #{tpu_custom_call.1} parent=1 // pred_check
      _
    $region7: #{tpu_custom_call.1} parent=1 // pred_check_branch
      %26 = sbr.rel (0) target = $region9
    $region8: #{tpu_custom_call.1} parent=1 // pred_region
      %s28 = ssub.s32 512, 512
      %29 = vsyncadd [#allocation6], %s28
      %s30 = sshll.u32 [#allocation5], 4
      %s31 = int_to_ptr.vmem [resolvable:$true] %s30
      %36 = dma.hbm_to_vmem [thread:$0]  %s1, 512, %s31, [#allocation6], 128, 128, 8
    $region9: #{tpu_custom_call.1} parent=1 // pred_fallthru
      _
    // Predicated region
    $region10: #{tpu_custom_call.1} parent=1 // pred_check
      _
    $region11: #{tpu_custom_call.1} parent=1 // pred_check_branch
      %38 = sbr.rel (0) target = $region13
    $region12: #{tpu_custom_call.1} parent=1 // pred_region
      _
    $region13: #{tpu_custom_call.1} parent=1 // pred_fallthru
      _
    // Predicated region
    $region14: #{tpu_custom_call.1} parent=1 // pred_check
      _
    $region15: #{tpu_custom_call.1} parent=1 // pred_check_branch
      %40 = sbr.rel (0) target = $region17
    $region16: #{tpu_custom_call.1} parent=1 // pred_region
      %s42 = ssub.s32 512, 512
      %43 = vsyncadd [#allocation6], %s42
      %s44 = sshll.u32 [#allocation7], 4
      %s45 = int_to_ptr.vmem [resolvable:$true] %s44
      %50 = dma.hbm_to_vmem [thread:$0]  %s3, 512, %s45, [#allocation6], 128, 128, 8
    $region17: #{tpu_custom_call.1} parent=1 // pred_fallthru
      _
    // Predicated region
    $region18: #{tpu_custom_call.1} parent=1 // pred_check
      _
    $region19: #{tpu_custom_call.1} parent=1 // pred_check_branch
      %52 = sbr.rel (0) target = $region21
    $region20: #{tpu_custom_call.1} parent=1 // pred_region
      _
    $region21: #{tpu_custom_call.1} parent=1 // pred_fallthru
      _
    // Predicated region
    $region22: #{tpu_custom_call.1} parent=1 // pred_check
      _
    $region23: #{tpu_custom_call.1} parent=1 // pred_check_branch
      %54 = sbr.rel (0) target = $region25
    $region24: #{tpu_custom_call.1} parent=1 // pred_region
      %55 = dma.done [#allocation3], 256
    $region25: #{tpu_custom_call.1} parent=1 // pred_fallthru
      _
    // Predicated region
    $region26: #{tpu_custom_call.1} parent=1 // pred_check
      _
    $region27: #{tpu_custom_call.1} parent=1 // pred_check_branch
      %57 = sbr.rel (0) target = $region29
    $region28: #{tpu_custom_call.1} parent=1 // pred_region
      %58 = dma.done [#allocation6], 512
    $region29: #{tpu_custom_call.1} parent=1 // pred_fallthru
      _
    // Predicated region
    $region30: #{tpu_custom_call.1} parent=1 // pred_check
      _
    $region31: #{tpu_custom_call.1} parent=1 // pred_check_branch
      %60 = sbr.rel (0) target = $region33
    $region32: #{tpu_custom_call.1} parent=1 // pred_region
      %61 = dma.done [#allocation6], 512
    $region33: #{tpu_custom_call.1} parent=1 // pred_fallthru
      _
    %v62 = vld [vmem:[#allocation2] sm:$0xff]
    %v63 = vld [vmem:[#allocation2 + $0x8] sm:$0xff]
    %v64 = vld [vmem:[#allocation5] sm:$0xff]
    %v65 = vld [vmem:[#allocation5 + $0x8] sm:$0xff]
    %v66 = vld [vmem:[#allocation5 + $0x10] sm:$0xff]
    %v67 = vld [vmem:[#allocation5 + $0x18] sm:$0xff]
    %v68 = vld [vmem:[%s2] sm:$0x1]
    %v70 = vlaneseq
    %v71 = vshrl.u32 %v70, 7
    %v72 = vsub.s32 0, %v71
    %v73 = vrot.slane %v68, %v72
    %vm75 = vcmask 261120
    %v77 = vsel %vm75, %v62, 0
    %v80 = vsel %vm75, %v63, 0
    %82 = vmatprep.subr.mxu0 0.0
    %83 = vmatpush1.msra.mxu0 0.0
    %84 = vmatprep.subr.mxu0 0.0
    %85 = vmatpush1.msra.mxu0 0.0
    %86 = vmatprep.subr.mxu0 0.0
    %87 = vmatpush1.msra.mxu0 0.0
    %88 = vmatprep.subr.mxu0 0.0
    %89 = vmatpush1.msra.mxu0 0.0
    %90 = vmatprep.subr.mxu0 0.0
    %91 = vmatpush1.msra.mxu0 0.0
    %92 = vmatprep.subr.mxu0 0.0
    %93 = vmatpush1.msra.mxu0 0.0
    %94 = vmatprep.subr.mxu0 0.0
    %95 = vmatpush1.msra.mxu0 0.0
    %96 = vmatprep.subr.mxu0 0.0
    %97 = vmatpush1.msra.mxu0 0.0
    %98 = vmatprep.subr.mxu0 0.0
    %99 = vmatpush1.msra.mxu0 0.0
    %100 = vmatprep.subr.mxu0 0.0
    %101 = vmatpush1.msra.mxu0 0.0
    %102 = vmatprep.subr.mxu0 0.0
    %103 = vmatpush1.msra.mxu0 0.0
    %104 = vmatprep.subr.mxu0 0.0
    %105 = vmatpush1.msra.mxu0 0.0
    %106 = vmatprep.subr.mxu0 0.0
    %107 = vmatpush1.msra.mxu0 %v67
    %108 = vmatprep.subr.mxu0 0.0
    %109 = vmatpush1.msra.mxu0 %v66
    %110 = vmatprep.subr.mxu0 0.0
    %111 = vmatpush1.msra.mxu0 %v65
    %112 = vmatprep.subr.mxu0 0.0
    %113 = vmatpush1.msra.mxu0 %v64
    %114 = vmatprep.subr.mxu0 0.0
    %115 = vmatpush2.msra.mxu0 0.0
    %116 = vmatprep.subr.mxu0 0.0
    %117 = vmatpush2.msra.mxu0 0.0
    %118 = vmatprep.subr.mxu0 0.0
    %119 = vmatpush2.msra.mxu0 0.0
    %120 = vmatprep.subr.mxu0 0.0
    %121 = vmatpush2.msra.mxu0 0.0
    %122 = vmatprep.subr.mxu0 0.0
    %123 = vmatpush2.msra.mxu0 0.0
    %124 = vmatprep.subr.mxu0 0.0
    %125 = vmatpush2.msra.mxu0 0.0
    %126 = vmatprep.subr.mxu0 0.0
    %127 = vmatpush2.msra.mxu0 0.0
    %128 = vmatprep.subr.mxu0 0.0
    %129 = vmatpush2.msra.mxu0 0.0
    %130 = vmatprep.subr.mxu0 0.0
    %131 = vmatpush2.msra.mxu0 0.0
    %132 = vmatprep.subr.mxu0 0.0
    %133 = vmatpush2.msra.mxu0 0.0
    %134 = vmatprep.subr.mxu0 0.0
    %135 = vmatpush2.msra.mxu0 0.0
    %136 = vmatprep.subr.mxu0 0.0
    %137 = vmatpush2.msra.mxu0 0.0
    %138 = vmatprep.subr.mxu0 0.0
    %139 = vmatpush2.msra.mxu0 0.0
    %140 = vmatprep.subr.mxu0 0.0
    %141 = vmatpush2.msra.mxu0 0.0
    %142 = vmatprep.subr.mxu0 0.0
    %143 = vmatpush2.msra.mxu0 0.0
    %144 = vmatprep.subr.mxu0 0.0
    %145 = vmatpush2.msra.mxu0 0.0
    %146 = vmatprep.mubr.f32.mxu0 0.0
    %147 = vmatmul.mubr.f32.gmra.mxu0 %v77
    %v148 = vpop.f32.mrf.mxu0
    %v149 = vadd.f32 %v73, %v148
    %v150 = vpop.f32.mrf.mxu0
    %151 = vmatprep.mubr.f32.mxu0 0.0
    %152 = vmatmul.mubr.f32.gmra.mxu0 %v80
    %v153 = vpop.f32.mrf.mxu0
    %v154 = vadd.f32 %v73, %v153
    %v155 = vpop.f32.mrf.mxu0
    %156 = vdwg.mxu0
    %v157 = vld [vmem:[#allocation7] sm:$0xff]
    %v158 = vld [vmem:[#allocation7 + $0x8] sm:$0xff]
    %v159 = vld [vmem:[#allocation7 + $0x10] sm:$0xff]
    %v160 = vld [vmem:[#allocation7 + $0x18] sm:$0xff]
    %v161 = vld [vmem:[%s4] sm:$0x1]
    %v163 = vlaneseq
    %v164 = vshrl.u32 %v163, 7
    %v165 = vsub.s32 0, %v164
    %v166 = vrot.slane %v161, %v165
    %169 = vrot.lane.b32.xlu0 %v149, 96
    %v170 = vpop.permute.xlu0 %169
    %vm171 = vcmask 64512
    %v172 = vsel %vm171, %v149, 0
    %v174 = vsel %vm171, %v170, 0
    %176 = vmatprep.subr.mxu0 0.0
    %177 = vmatpush1.xpose.msra.mxu0 0.0
    %178 = vmatprep.subr.mxu0 0.0
    %179 = vmatpush1.xpose.msra.mxu0 0.0
    %180 = vmatprep.subr.mxu0 0.0
    %181 = vmatpush1.xpose.msra.mxu0 0.0
    %182 = vmatprep.subr.mxu0 0.0
    %183 = vmatpush1.xpose.msra.mxu0 0.0
    %184 = vmatprep.subr.mxu0 0.0
    %185 = vmatpush1.xpose.msra.mxu0 0.0
    %186 = vmatprep.subr.mxu0 0.0
    %187 = vmatpush1.xpose.msra.mxu0 0.0
    %188 = vmatprep.subr.mxu0 0.0
    %189 = vmatpush1.xpose.msra.mxu0 0.0
    %190 = vmatprep.subr.mxu0 0.0
    %191 = vmatpush1.xpose.msra.mxu0 0.0
    %192 = vmatprep.subr.mxu0 0.0
    %193 = vmatpush1.xpose.msra.mxu0 0.0
    %194 = vmatprep.subr.mxu0 0.0
    %195 = vmatpush1.xpose.msra.mxu0 0.0
    %196 = vmatprep.subr.mxu0 0.0
    %197 = vmatpush1.xpose.msra.mxu0 0.0
    %198 = vmatprep.subr.mxu0 0.0
    %199 = vmatpush1.xpose.msra.mxu0 0.0
    %200 = vmatprep.subr.mxu0 0.0
    %201 = vmatpush1.xpose.msra.mxu0 0.0
    %202 = vmatprep.subr.mxu0 0.0
    %203 = vmatpush1.xpose.msra.mxu0 0.0
    %204 = vmatprep.subr.mxu0 0.0
    %205 = vmatpush1.xpose.msra.mxu0 0.0
    %206 = vmatprep.subr.mxu0 0.0
    %207 = vmatpush1.xpose.msra.mxu0 %v174
    %208 = vmatprep.subr.mxu0 0.0
    %209 = vmatpush2.xpose.msra.mxu0 0.0
    %210 = vmatprep.subr.mxu0 0.0
    %211 = vmatpush2.xpose.msra.mxu0 0.0
    %212 = vmatprep.subr.mxu0 0.0
    %213 = vmatpush2.xpose.msra.mxu0 0.0
    %214 = vmatprep.subr.mxu0 0.0
    %215 = vmatpush2.xpose.msra.mxu0 0.0
    %216 = vmatprep.subr.mxu0 0.0
    %217 = vmatpush2.xpose.msra.mxu0 0.0
    %218 = vmatprep.subr.mxu0 0.0
    %219 = vmatpush2.xpose.msra.mxu0 0.0
    %220 = vmatprep.subr.mxu0 0.0
    %221 = vmatpush2.xpose.msra.mxu0 0.0
    %222 = vmatprep.subr.mxu0 0.0
    %223 = vmatpush2.xpose.msra.mxu0 0.0
    %224 = vmatprep.subr.mxu0 0.0
    %225 = vmatpush2.xpose.msra.mxu0 0.0
    %226 = vmatprep.subr.mxu0 0.0
    %227 = vmatpush2.xpose.msra.mxu0 0.0
    %228 = vmatprep.subr.mxu0 0.0
    %229 = vmatpush2.xpose.msra.mxu0 0.0
    %230 = vmatprep.subr.mxu0 0.0
    %231 = vmatpush2.xpose.msra.mxu0 0.0
    %232 = vmatprep.subr.mxu0 0.0
    %233 = vmatpush2.xpose.msra.mxu0 0.0
    %234 = vmatprep.subr.mxu0 0.0
    %235 = vmatpush2.xpose.msra.mxu0 0.0
    %236 = vmatprep.subr.mxu0 0.0
    %237 = vmatpush2.xpose.msra.mxu0 0.0
    %238 = vmatprep.subr.mxu0 0.0
    %239 = vmatpush2.xpose.msra.mxu0 0.0
    %240 = vmatprep.mubr.f32.mxu0 0.0
    %241 = vmatmul.mubr.f32.gmra.mxu0 %v172
    %v242 = vpop.f32.mrf.mxu0
    %v243 = vadd.f32 0.0, %v242
    %v244 = vpop.f32.mrf.mxu0
    %245 = vdwg.mxu0
    %247 = vrot.lane.b32.xlu0 %v154, 96
    %v248 = vpop.permute.xlu0 %247
    %v249 = vsel %vm171, %v154, 0
    %v251 = vsel %vm171, %v248, 0
    %253 = vmatprep.subr.mxu0 0.0
    %254 = vmatpush1.xpose.msra.mxu0 0.0
    %255 = vmatprep.subr.mxu0 0.0
    %256 = vmatpush1.xpose.msra.mxu0 0.0
    %257 = vmatprep.subr.mxu0 0.0
    %258 = vmatpush1.xpose.msra.mxu0 0.0
    %259 = vmatprep.subr.mxu0 0.0
    %260 = vmatpush1.xpose.msra.mxu0 0.0
    %261 = vmatprep.subr.mxu0 0.0
    %262 = vmatpush1.xpose.msra.mxu0 0.0
    %263 = vmatprep.subr.mxu0 0.0
    %264 = vmatpush1.xpose.msra.mxu0 0.0
    %265 = vmatprep.subr.mxu0 0.0
    %266 = vmatpush1.xpose.msra.mxu0 0.0
    %267 = vmatprep.subr.mxu0 0.0
    %268 = vmatpush1.xpose.msra.mxu0 0.0
    %269 = vmatprep.subr.mxu0 0.0
    %270 = vmatpush1.xpose.msra.mxu0 0.0
    %271 = vmatprep.subr.mxu0 0.0
    %272 = vmatpush1.xpose.msra.mxu0 0.0
    %273 = vmatprep.subr.mxu0 0.0
    %274 = vmatpush1.xpose.msra.mxu0 0.0
    %275 = vmatprep.subr.mxu0 0.0
    %276 = vmatpush1.xpose.msra.mxu0 0.0
    %277 = vmatprep.subr.mxu0 0.0
    %278 = vmatpush1.xpose.msra.mxu0 0.0
    %279 = vmatprep.subr.mxu0 0.0
    %280 = vmatpush1.xpose.msra.mxu0 0.0
    %281 = vmatprep.subr.mxu0 0.0
    %282 = vmatpush1.xpose.msra.mxu0 0.0
    %283 = vmatprep.subr.mxu0 0.0
    %284 = vmatpush1.xpose.msra.mxu0 %v251
    %285 = vmatprep.subr.mxu0 0.0
    %286 = vmatpush2.xpose.msra.mxu0 0.0
    %287 = vmatprep.subr.mxu0 0.0
    %288 = vmatpush2.xpose.msra.mxu0 0.0
    %289 = vmatprep.subr.mxu0 0.0
    %290 = vmatpush2.xpose.msra.mxu0 0.0
    %291 = vmatprep.subr.mxu0 0.0
    %292 = vmatpush2.xpose.msra.mxu0 0.0
    %293 = vmatprep.subr.mxu0 0.0
    %294 = vmatpush2.xpose.msra.mxu0 0.0
    %295 = vmatprep.subr.mxu0 0.0
    %296 = vmatpush2.xpose.msra.mxu0 0.0
    %297 = vmatprep.subr.mxu0 0.0
    %298 = vmatpush2.xpose.msra.mxu0 0.0
    %299 = vmatprep.subr.mxu0 0.0
    %300 = vmatpush2.xpose.msra.mxu0 0.0
    %301 = vmatprep.subr.mxu0 0.0
    %302 = vmatpush2.xpose.msra.mxu0 0.0
    %303 = vmatprep.subr.mxu0 0.0
    %304 = vmatpush2.xpose.msra.mxu0 0.0
    %305 = vmatprep.subr.mxu0 0.0
    %306 = vmatpush2.xpose.msra.mxu0 0.0
    %307 = vmatprep.subr.mxu0 0.0
    %308 = vmatpush2.xpose.msra.mxu0 0.0
    %309 = vmatprep.subr.mxu0 0.0
    %310 = vmatpush2.xpose.msra.mxu0 0.0
    %311 = vmatprep.subr.mxu0 0.0
    %312 = vmatpush2.xpose.msra.mxu0 0.0
    %313 = vmatprep.subr.mxu0 0.0
    %314 = vmatpush2.xpose.msra.mxu0 0.0
    %315 = vmatprep.subr.mxu0 0.0
    %316 = vmatpush2.xpose.msra.mxu0 0.0
    %317 = vmatprep.mubr.f32.mxu0 0.0
    %318 = vmatmul.mubr.f32.gmra.mxu0 %v249
    %v319 = vpop.f32.mrf.mxu0
    %v320 = vadd.f32 0.0, %v319
    %v321 = vpop.f32.mrf.mxu0
    %322 = vdwg.mxu0
    %v323 = vsel %vm171, %v243, -inf
    %324 = vmax.xlane.f32.xlu0 %v323
    %v325 = vpop.xlane.xlu0 %324
    %v326 = vsel %vm171, %v320, -inf
    %327 = vmax.xlane.f32.xlu0 %v326
    %v328 = vpop.xlane.xlu0 %327
    %v329 = vsub.f32 %v243, %v325
    %v330 = vsub.f32 %v320, %v328
    %v331 = vmul.f32 %v329, 1.442695
    %v332 = vpow.pop %v331
    %v333 = vmul.f32 %v330, 1.442695
    %v334 = vpow.pop %v333
    %v335 = vsel %vm171, %v332, 0.0
    %336 = vadd.xlane.f32.xlu0 %v335
    %v337 = vpop.xlane.xlu0 %336
    %v338 = vsel %vm171, %v334, 0.0
    %339 = vadd.xlane.f32.xlu0 %v338
    %v340 = vpop.xlane.xlu0 %339
    %341 = vrot.lane.b32.xlu0 %v149, 64
    %v342 = vpop.permute.xlu0 %341
    %v345 = vsel %vm171, %v332, 0
    %347 = vmatprep.subr.mxu0 0.0
    %348 = vmatpush1.msra.mxu0 0.0
    %349 = vmatprep.subr.mxu0 0.0
    %350 = vmatpush1.msra.mxu0 0.0
    %351 = vmatprep.subr.mxu0 0.0
    %352 = vmatpush1.msra.mxu0 0.0
    %353 = vmatprep.subr.mxu0 0.0
    %354 = vmatpush1.msra.mxu0 0.0
    %355 = vmatprep.subr.mxu0 0.0
    %356 = vmatpush1.msra.mxu0 0.0
    %357 = vmatprep.subr.mxu0 0.0
    %358 = vmatpush1.msra.mxu0 0.0
    %359 = vmatprep.subr.mxu0 0.0
    %360 = vmatpush1.msra.mxu0 0.0
    %361 = vmatprep.subr.mxu0 0.0
    %362 = vmatpush1.msra.mxu0 0.0
    %363 = vmatprep.subr.mxu0 0.0
    %364 = vmatpush1.msra.mxu0 0.0
    %365 = vmatprep.subr.mxu0 0.0
    %366 = vmatpush1.msra.mxu0 0.0
    %367 = vmatprep.subr.mxu0 0.0
    %368 = vmatpush1.msra.mxu0 0.0
    %369 = vmatprep.subr.mxu0 0.0
    %370 = vmatpush1.msra.mxu0 0.0
    %371 = vmatprep.subr.mxu0 0.0
    %372 = vmatpush1.msra.mxu0 0.0
    %373 = vmatprep.subr.mxu0 0.0
    %374 = vmatpush1.msra.mxu0 0.0
    %375 = vmatprep.subr.mxu0 0.0
    %376 = vmatpush1.msra.mxu0 0.0
    %377 = vmatprep.subr.mxu0 0.0
    %378 = vmatpush1.msra.mxu0 %v342
    %379 = vmatprep.subr.mxu0 0.0
    %380 = vmatpush2.msra.mxu0 0.0
    %381 = vmatprep.subr.mxu0 0.0
    %382 = vmatpush2.msra.mxu0 0.0
    %383 = vmatprep.subr.mxu0 0.0
    %384 = vmatpush2.msra.mxu0 0.0
    %385 = vmatprep.subr.mxu0 0.0
    %386 = vmatpush2.msra.mxu0 0.0
    %387 = vmatprep.subr.mxu0 0.0
    %388 = vmatpush2.msra.mxu0 0.0
    %389 = vmatprep.subr.mxu0 0.0
    %390 = vmatpush2.msra.mxu0 0.0
    %391 = vmatprep.subr.mxu0 0.0
    %392 = vmatpush2.msra.mxu0 0.0
    %393 = vmatprep.subr.mxu0 0.0
    %394 = vmatpush2.msra.mxu0 0.0
    %395 = vmatprep.subr.mxu0 0.0
    %396 = vmatpush2.msra.mxu0 0.0
    %397 = vmatprep.subr.mxu0 0.0
    %398 = vmatpush2.msra.mxu0 0.0
    %399 = vmatprep.subr.mxu0 0.0
    %400 = vmatpush2.msra.mxu0 0.0
    %401 = vmatprep.subr.mxu0 0.0
    %402 = vmatpush2.msra.mxu0 0.0
    %403 = vmatprep.subr.mxu0 0.0
    %404 = vmatpush2.msra.mxu0 0.0
    %405 = vmatprep.subr.mxu0 0.0
    %406 = vmatpush2.msra.mxu0 0.0
    %407 = vmatprep.subr.mxu0 0.0
    %408 = vmatpush2.msra.mxu0 0.0
    %409 = vmatprep.subr.mxu0 0.0
    %410 = vmatpush2.msra.mxu0 0.0
    %411 = vmatprep.mubr.f32.mxu0 0.0
    %412 = vmatmul.mubr.f32.gmra.mxu0 %v345
    %v413 = vpop.f32.mrf.mxu0
    %v414 = vadd.f32 0.0, %v413
    %v415 = vpop.f32.mrf.mxu0
    %416 = vdwg.mxu0
    %417 = vrot.lane.b32.xlu0 %v154, 64
    %v418 = vpop.permute.xlu0 %417
    %v421 = vsel %vm171, %v334, 0
    %423 = vmatprep.subr.mxu0 0.0
    %424 = vmatpush1.msra.mxu0 0.0
    %425 = vmatprep.subr.mxu0 0.0
    %426 = vmatpush1.msra.mxu0 0.0
    %427 = vmatprep.subr.mxu0 0.0
    %428 = vmatpush1.msra.mxu0 0.0
    %429 = vmatprep.subr.mxu0 0.0
    %430 = vmatpush1.msra.mxu0 0.0
    %431 = vmatprep.subr.mxu0 0.0
    %432 = vmatpush1.msra.mxu0 0.0
    %433 = vmatprep.subr.mxu0 0.0
    %434 = vmatpush1.msra.mxu0 0.0
    %435 = vmatprep.subr.mxu0 0.0
    %436 = vmatpush1.msra.mxu0 0.0
    %437 = vmatprep.subr.mxu0 0.0
    %438 = vmatpush1.msra.mxu0 0.0
    %439 = vmatprep.subr.mxu0 0.0
    %440 = vmatpush1.msra.mxu0 0.0
    %441 = vmatprep.subr.mxu0 0.0
    %442 = vmatpush1.msra.mxu0 0.0
    %443 = vmatprep.subr.mxu0 0.0
    %444 = vmatpush1.msra.mxu0 0.0
    %445 = vmatprep.subr.mxu0 0.0
    %446 = vmatpush1.msra.mxu0 0.0
    %447 = vmatprep.subr.mxu0 0.0
    %448 = vmatpush1.msra.mxu0 0.0
    %449 = vmatprep.subr.mxu0 0.0
    %450 = vmatpush1.msra.mxu0 0.0
    %451 = vmatprep.subr.mxu0 0.0
    %452 = vmatpush1.msra.mxu0 0.0
    %453 = vmatprep.subr.mxu0 0.0
    %454 = vmatpush1.msra.mxu0 %v418
    %455 = vmatprep.subr.mxu0 0.0
    %456 = vmatpush2.msra.mxu0 0.0
    %457 = vmatprep.subr.mxu0 0.0
    %458 = vmatpush2.msra.mxu0 0.0
    %459 = vmatprep.subr.mxu0 0.0
    %460 = vmatpush2.msra.mxu0 0.0
    %461 = vmatprep.subr.mxu0 0.0
    %462 = vmatpush2.msra.mxu0 0.0
    %463 = vmatprep.subr.mxu0 0.0
    %464 = vmatpush2.msra.mxu0 0.0
    %465 = vmatprep.subr.mxu0 0.0
    %466 = vmatpush2.msra.mxu0 0.0
    %467 = vmatprep.subr.mxu0 0.0
    %468 = vmatpush2.msra.mxu0 0.0
    %469 = vmatprep.subr.mxu0 0.0
    %470 = vmatpush2.msra.mxu0 0.0
    %471 = vmatprep.subr.mxu0 0.0
    %472 = vmatpush2.msra.mxu0 0.0
    %473 = vmatprep.subr.mxu0 0.0
    %474 = vmatpush2.msra.mxu0 0.0
    %475 = vmatprep.subr.mxu0 0.0
    %476 = vmatpush2.msra.mxu0 0.0
    %477 = vmatprep.subr.mxu0 0.0
    %478 = vmatpush2.msra.mxu0 0.0
    %479 = vmatprep.subr.mxu0 0.0
    %480 = vmatpush2.msra.mxu0 0.0
    %481 = vmatprep.subr.mxu0 0.0
    %482 = vmatpush2.msra.mxu0 0.0
    %483 = vmatprep.subr.mxu0 0.0
    %484 = vmatpush2.msra.mxu0 0.0
    %485 = vmatprep.subr.mxu0 0.0
    %486 = vmatpush2.msra.mxu0 0.0
    %487 = vmatprep.mubr.f32.mxu0 0.0
    %488 = vmatmul.mubr.f32.gmra.mxu0 %v421
    %v489 = vpop.f32.mrf.mxu0
    %v490 = vadd.f32 0.0, %v489
    %v491 = vpop.f32.mrf.mxu0
    %492 = vdwg.mxu0
    %v493 = vrcp.pop %v337
    %v494 = vrcp.pop %v340
    %v495 = vmul.f32 %v414, %v493
    %v496 = vmul.f32 %v490, %v494
    %v498 = vsel %vm171, %v495, 0
    %v501 = vsel %vm171, %v496, 0
    %503 = vmatprep.subr.mxu0 0.0
    %504 = vmatpush1.msra.mxu0 0.0
    %505 = vmatprep.subr.mxu0 0.0
    %506 = vmatpush1.msra.mxu0 0.0
    %507 = vmatprep.subr.mxu0 0.0
    %508 = vmatpush1.msra.mxu0 0.0
    %509 = vmatprep.subr.mxu0 0.0
    %510 = vmatpush1.msra.mxu0 0.0
    %511 = vmatprep.subr.mxu0 0.0
    %512 = vmatpush1.msra.mxu0 0.0
    %513 = vmatprep.subr.mxu0 0.0
    %514 = vmatpush1.msra.mxu0 0.0
    %515 = vmatprep.subr.mxu0 0.0
    %516 = vmatpush1.msra.mxu0 0.0
    %517 = vmatprep.subr.mxu0 0.0
    %518 = vmatpush1.msra.mxu0 0.0
    %519 = vmatprep.subr.mxu0 0.0
    %520 = vmatpush1.msra.mxu0 0.0
    %521 = vmatprep.subr.mxu0 0.0
    %522 = vmatpush1.msra.mxu0 0.0
    %523 = vmatprep.subr.mxu0 0.0
    %524 = vmatpush1.msra.mxu0 0.0
    %525 = vmatprep.subr.mxu0 0.0
    %526 = vmatpush1.msra.mxu0 0.0
    %527 = vmatprep.subr.mxu0 0.0
    %528 = vmatpush1.msra.mxu0 0.0
    %529 = vmatprep.subr.mxu0 0.0
    %530 = vmatpush1.msra.mxu0 0.0
    %531 = vmatprep.subr.mxu0 0.0
    %532 = vmatpush1.msra.mxu0 0.0
    %533 = vmatprep.subr.mxu0 0.0
    %534 = vmatpush1.msra.mxu0 %v157
    %535 = vmatprep.subr.mxu0 0.0
    %536 = vmatpush2.msra.mxu0 0.0
    %537 = vmatprep.subr.mxu0 0.0
    %538 = vmatpush2.msra.mxu0 0.0
    %539 = vmatprep.subr.mxu0 0.0
    %540 = vmatpush2.msra.mxu0 0.0
    %541 = vmatprep.subr.mxu0 0.0
    %542 = vmatpush2.msra.mxu0 0.0
    %543 = vmatprep.subr.mxu0 0.0
    %544 = vmatpush2.msra.mxu0 0.0
    %545 = vmatprep.subr.mxu0 0.0
    %546 = vmatpush2.msra.mxu0 0.0
    %547 = vmatprep.subr.mxu0 0.0
    %548 = vmatpush2.msra.mxu0 0.0
    %549 = vmatprep.subr.mxu0 0.0
    %550 = vmatpush2.msra.mxu0 0.0
    %551 = vmatprep.subr.mxu0 0.0
    %552 = vmatpush2.msra.mxu0 0.0
    %553 = vmatprep.subr.mxu0 0.0
    %554 = vmatpush2.msra.mxu0 0.0
    %555 = vmatprep.subr.mxu0 0.0
    %556 = vmatpush2.msra.mxu0 0.0
    %557 = vmatprep.subr.mxu0 0.0
    %558 = vmatpush2.msra.mxu0 0.0
    %559 = vmatprep.subr.mxu0 0.0
    %560 = vmatpush2.msra.mxu0 0.0
    %561 = vmatprep.subr.mxu0 0.0
    %562 = vmatpush2.msra.mxu0 0.0
    %563 = vmatprep.subr.mxu0 0.0
    %564 = vmatpush2.msra.mxu0 0.0
    %565 = vmatprep.subr.mxu0 0.0
    %566 = vmatpush2.msra.mxu0 0.0
    %567 = vmatprep.mubr.f32.mxu0 0.0
    %568 = vmatmul.mubr.f32.gmra.mxu0 %v498
    %v569 = vpop.f32.mrf.mxu0
    %v570 = vadd.f32 0.0, %v569
    %v571 = vpop.f32.mrf.mxu0
    %572 = vmatprep.mubr.f32.mxu0 0.0
    %573 = vmatmul.mubr.f32.gmra.mxu0 %v501
    %v574 = vpop.f32.mrf.mxu0
    %v575 = vadd.f32 0.0, %v574
    %v576 = vpop.f32.mrf.mxu0
    %577 = vdwg.mxu0
    %v578 = vadd.f32 %v166, %v570
    %v579 = vadd.f32 %v166, %v575
    %580 = vrot.lane.b32.xlu0 %v149, 120
    %v581 = vpop.permute.xlu0 %580
    %582 = vrot.lane.b32.xlu0 %v149, 88
    %v583 = vpop.permute.xlu0 %582
    %v584 = vsel %vm171, %v581, 0
    %v586 = vsel %vm171, %v583, 0
    %588 = vmatprep.subr.mxu0 0.0
    %589 = vmatpush1.xpose.msra.mxu0 0.0
    %590 = vmatprep.subr.mxu0 0.0
    %591 = vmatpush1.xpose.msra.mxu0 0.0
    %592 = vmatprep.subr.mxu0 0.0
    %593 = vmatpush1.xpose.msra.mxu0 0.0
    %594 = vmatprep.subr.mxu0 0.0
    %595 = vmatpush1.xpose.msra.mxu0 0.0
    %596 = vmatprep.subr.mxu0 0.0
    %597 = vmatpush1.xpose.msra.mxu0 0.0
    %598 = vmatprep.subr.mxu0 0.0
    %599 = vmatpush1.xpose.msra.mxu0 0.0
    %600 = vmatprep.subr.mxu0 0.0
    %601 = vmatpush1.xpose.msra.mxu0 0.0
    %602 = vmatprep.subr.mxu0 0.0
    %603 = vmatpush1.xpose.msra.mxu0 0.0
    %604 = vmatprep.subr.mxu0 0.0
    %605 = vmatpush1.xpose.msra.mxu0 0.0
    %606 = vmatprep.subr.mxu0 0.0
    %607 = vmatpush1.xpose.msra.mxu0 0.0
    %608 = vmatprep.subr.mxu0 0.0
    %609 = vmatpush1.xpose.msra.mxu0 0.0
    %610 = vmatprep.subr.mxu0 0.0
    %611 = vmatpush1.xpose.msra.mxu0 0.0
    %612 = vmatprep.subr.mxu0 0.0
    %613 = vmatpush1.xpose.msra.mxu0 0.0
    %614 = vmatprep.subr.mxu0 0.0
    %615 = vmatpush1.xpose.msra.mxu0 0.0
    %616 = vmatprep.subr.mxu0 0.0
    %617 = vmatpush1.xpose.msra.mxu0 0.0
    %618 = vmatprep.subr.mxu0 0.0
    %619 = vmatpush1.xpose.msra.mxu0 %v586
    %620 = vmatprep.subr.mxu0 0.0
    %621 = vmatpush2.xpose.msra.mxu0 0.0
    %622 = vmatprep.subr.mxu0 0.0
    %623 = vmatpush2.xpose.msra.mxu0 0.0
    %624 = vmatprep.subr.mxu0 0.0
    %625 = vmatpush2.xpose.msra.mxu0 0.0
    %626 = vmatprep.subr.mxu0 0.0
    %627 = vmatpush2.xpose.msra.mxu0 0.0
    %628 = vmatprep.subr.mxu0 0.0
    %629 = vmatpush2.xpose.msra.mxu0 0.0
    %630 = vmatprep.subr.mxu0 0.0
    %631 = vmatpush2.xpose.msra.mxu0 0.0
    %632 = vmatprep.subr.mxu0 0.0
    %633 = vmatpush2.xpose.msra.mxu0 0.0
    %634 = vmatprep.subr.mxu0 0.0
    %635 = vmatpush2.xpose.msra.mxu0 0.0
    %636 = vmatprep.subr.mxu0 0.0
    %637 = vmatpush2.xpose.msra.mxu0 0.0
    %638 = vmatprep.subr.mxu0 0.0
    %639 = vmatpush2.xpose.msra.mxu0 0.0
    %640 = vmatprep.subr.mxu0 0.0
    %641 = vmatpush2.xpose.msra.mxu0 0.0
    %642 = vmatprep.subr.mxu0 0.0
    %643 = vmatpush2.xpose.msra.mxu0 0.0
    %644 = vmatprep.subr.mxu0 0.0
    %645 = vmatpush2.xpose.msra.mxu0 0.0
    %646 = vmatprep.subr.mxu0 0.0
    %647 = vmatpush2.xpose.msra.mxu0 0.0
    %648 = vmatprep.subr.mxu0 0.0
    %649 = vmatpush2.xpose.msra.mxu0 0.0
    %650 = vmatprep.subr.mxu0 0.0
    %651 = vmatpush2.xpose.msra.mxu0 0.0
    %652 = vmatprep.mubr.f32.mxu0 0.0
    %653 = vmatmul.mubr.f32.gmra.mxu0 %v584
    %v654 = vpop.f32.mrf.mxu0
    %v655 = vadd.f32 0.0, %v654
    %v656 = vpop.f32.mrf.mxu0
    %657 = vdwg.mxu0
    %658 = vrot.lane.b32.xlu0 %v154, 120
    %v659 = vpop.permute.xlu0 %658
    %660 = vrot.lane.b32.xlu0 %v154, 88
    %v661 = vpop.permute.xlu0 %660
    %v662 = vsel %vm171, %v659, 0
    %v664 = vsel %vm171, %v661, 0
    %666 = vmatprep.subr.mxu0 0.0
    %667 = vmatpush1.xpose.msra.mxu0 0.0
    %668 = vmatprep.subr.mxu0 0.0
    %669 = vmatpush1.xpose.msra.mxu0 0.0
    %670 = vmatprep.subr.mxu0 0.0
    %671 = vmatpush1.xpose.msra.mxu0 0.0
    %672 = vmatprep.subr.mxu0 0.0
    %673 = vmatpush1.xpose.msra.mxu0 0.0
    %674 = vmatprep.subr.mxu0 0.0
    %675 = vmatpush1.xpose.msra.mxu0 0.0
    %676 = vmatprep.subr.mxu0 0.0
    %677 = vmatpush1.xpose.msra.mxu0 0.0
    %678 = vmatprep.subr.mxu0 0.0
    %679 = vmatpush1.xpose.msra.mxu0 0.0
    %680 = vmatprep.subr.mxu0 0.0
    %681 = vmatpush1.xpose.msra.mxu0 0.0
    %682 = vmatprep.subr.mxu0 0.0
    %683 = vmatpush1.xpose.msra.mxu0 0.0
    %684 = vmatprep.subr.mxu0 0.0
    %685 = vmatpush1.xpose.msra.mxu0 0.0
    %686 = vmatprep.subr.mxu0 0.0
    %687 = vmatpush1.xpose.msra.mxu0 0.0
    %688 = vmatprep.subr.mxu0 0.0
    %689 = vmatpush1.xpose.msra.mxu0 0.0
    %690 = vmatprep.subr.mxu0 0.0
    %691 = vmatpush1.xpose.msra.mxu0 0.0
    %692 = vmatprep.subr.mxu0 0.0
    %693 = vmatpush1.xpose.msra.mxu0 0.0
    %694 = vmatprep.subr.mxu0 0.0
    %695 = vmatpush1.xpose.msra.mxu0 0.0
    %696 = vmatprep.subr.mxu0 0.0
    %697 = vmatpush1.xpose.msra.mxu0 %v664
    %698 = vmatprep.subr.mxu0 0.0
    %699 = vmatpush2.xpose.msra.mxu0 0.0
    %700 = vmatprep.subr.mxu0 0.0
    %701 = vmatpush2.xpose.msra.mxu0 0.0
    %702 = vmatprep.subr.mxu0 0.0
    %703 = vmatpush2.xpose.msra.mxu0 0.0
    %704 = vmatprep.subr.mxu0 0.0
    %705 = vmatpush2.xpose.msra.mxu0 0.0
    %706 = vmatprep.subr.mxu0 0.0
    %707 = vmatpush2.xpose.msra.mxu0 0.0
    %708 = vmatprep.subr.mxu0 0.0
    %709 = vmatpush2.xpose.msra.mxu0 0.0
    %710 = vmatprep.subr.mxu0 0.0
    %711 = vmatpush2.xpose.msra.mxu0 0.0
    %712 = vmatprep.subr.mxu0 0.0
    %713 = vmatpush2.xpose.msra.mxu0 0.0
    %714 = vmatprep.subr.mxu0 0.0
    %715 = vmatpush2.xpose.msra.mxu0 0.0
    %716 = vmatprep.subr.mxu0 0.0
    %717 = vmatpush2.xpose.msra.mxu0 0.0
    %718 = vmatprep.subr.mxu0 0.0
    %719 = vmatpush2.xpose.msra.mxu0 0.0
    %720 = vmatprep.subr.mxu0 0.0
    %721 = vmatpush2.xpose.msra.mxu0 0.0
    %722 = vmatprep.subr.mxu0 0.0
    %723 = vmatpush2.xpose.msra.mxu0 0.0
    %724 = vmatprep.subr.mxu0 0.0
    %725 = vmatpush2.xpose.msra.mxu0 0.0
    %726 = vmatprep.subr.mxu0 0.0
    %727 = vmatpush2.xpose.msra.mxu0 0.0
    %728 = vmatprep.subr.mxu0 0.0
    %729 = vmatpush2.xpose.msra.mxu0 0.0
    %730 = vmatprep.mubr.f32.mxu0 0.0
    %731 = vmatmul.mubr.f32.gmra.mxu0 %v662
    %v732 = vpop.f32.mrf.mxu0
    %v733 = vadd.f32 0.0, %v732
    %v734 = vpop.f32.mrf.mxu0
    %735 = vdwg.mxu0
    %v736 = vsel %vm171, %v655, -inf
    %737 = vmax.xlane.f32.xlu0 %v736
    %v738 = vpop.xlane.xlu0 %737
    %v739 = vsel %vm171, %v733, -inf
    %740 = vmax.xlane.f32.xlu0 %v739
    %v741 = vpop.xlane.xlu0 %740
    %v742 = vsub.f32 %v655, %v738
    %v743 = vsub.f32 %v733, %v741
    %v744 = vmul.f32 %v742, 1.442695
    %v745 = vpow.pop %v744
    %v746 = vmul.f32 %v743, 1.442695
    %v747 = vpow.pop %v746
    %v748 = vsel %vm171, %v745, 0.0
    %749 = vadd.xlane.f32.xlu0 %v748
    %v750 = vpop.xlane.xlu0 %749
    %v751 = vsel %vm171, %v747, 0.0
    %752 = vadd.xlane.f32.xlu0 %v751
    %v753 = vpop.xlane.xlu0 %752
    %754 = vrot.lane.b32.xlu0 %v149, 56
    %v755 = vpop.permute.xlu0 %754
    %v758 = vsel %vm171, %v745, 0
    %760 = vmatprep.subr.mxu0 0.0
    %761 = vmatpush1.msra.mxu0 0.0
    %762 = vmatprep.subr.mxu0 0.0
    %763 = vmatpush1.msra.mxu0 0.0
    %764 = vmatprep.subr.mxu0 0.0
    %765 = vmatpush1.msra.mxu0 0.0
    %766 = vmatprep.subr.mxu0 0.0
    %767 = vmatpush1.msra.mxu0 0.0
    %768 = vmatprep.subr.mxu0 0.0
    %769 = vmatpush1.msra.mxu0 0.0
    %770 = vmatprep.subr.mxu0 0.0
    %771 = vmatpush1.msra.mxu0 0.0
    %772 = vmatprep.subr.mxu0 0.0
    %773 = vmatpush1.msra.mxu0 0.0
    %774 = vmatprep.subr.mxu0 0.0
    %775 = vmatpush1.msra.mxu0 0.0
    %776 = vmatprep.subr.mxu0 0.0
    %777 = vmatpush1.msra.mxu0 0.0
    %778 = vmatprep.subr.mxu0 0.0
    %779 = vmatpush1.msra.mxu0 0.0
    %780 = vmatprep.subr.mxu0 0.0
    %781 = vmatpush1.msra.mxu0 0.0
    %782 = vmatprep.subr.mxu0 0.0
    %783 = vmatpush1.msra.mxu0 0.0
    %784 = vmatprep.subr.mxu0 0.0
    %785 = vmatpush1.msra.mxu0 0.0
    %786 = vmatprep.subr.mxu0 0.0
    %787 = vmatpush1.msra.mxu0 0.0
    %788 = vmatprep.subr.mxu0 0.0
    %789 = vmatpush1.msra.mxu0 0.0
    %790 = vmatprep.subr.mxu0 0.0
    %791 = vmatpush1.msra.mxu0 %v755
    %792 = vmatprep.subr.mxu0 0.0
    %793 = vmatpush2.msra.mxu0 0.0
    %794 = vmatprep.subr.mxu0 0.0
    %795 = vmatpush2.msra.mxu0 0.0
    %796 = vmatprep.subr.mxu0 0.0
    %797 = vmatpush2.msra.mxu0 0.0
    %798 = vmatprep.subr.mxu0 0.0
    %799 = vmatpush2.msra.mxu0 0.0
    %800 = vmatprep.subr.mxu0 0.0
    %801 = vmatpush2.msra.mxu0 0.0
    %802 = vmatprep.subr.mxu0 0.0
    %803 = vmatpush2.msra.mxu0 0.0
    %804 = vmatprep.subr.mxu0 0.0
    %805 = vmatpush2.msra.mxu0 0.0
    %806 = vmatprep.subr.mxu0 0.0
    %807 = vmatpush2.msra.mxu0 0.0
    %808 = vmatprep.subr.mxu0 0.0
    %809 = vmatpush2.msra.mxu0 0.0
    %810 = vmatprep.subr.mxu0 0.0
    %811 = vmatpush2.msra.mxu0 0.0
    %812 = vmatprep.subr.mxu0 0.0
    %813 = vmatpush2.msra.mxu0 0.0
    %814 = vmatprep.subr.mxu0 0.0
    %815 = vmatpush2.msra.mxu0 0.0
    %816 = vmatprep.subr.mxu0 0.0
    %817 = vmatpush2.msra.mxu0 0.0
    %818 = vmatprep.subr.mxu0 0.0
    %819 = vmatpush2.msra.mxu0 0.0
    %820 = vmatprep.subr.mxu0 0.0
    %821 = vmatpush2.msra.mxu0 0.0
    %822 = vmatprep.subr.mxu0 0.0
    %823 = vmatpush2.msra.mxu0 0.0
    %824 = vmatprep.mubr.f32.mxu0 0.0
    %825 = vmatmul.mubr.f32.gmra.mxu0 %v758
    %v826 = vpop.f32.mrf.mxu0
    %v827 = vadd.f32 0.0, %v826
    %v828 = vpop.f32.mrf.mxu0
    %829 = vdwg.mxu0
    %830 = vrot.lane.b32.xlu0 %v154, 56
    %v831 = vpop.permute.xlu0 %830
    %v834 = vsel %vm171, %v747, 0
    %836 = vmatprep.subr.mxu0 0.0
    %837 = vmatpush1.msra.mxu0 0.0
    %838 = vmatprep.subr.mxu0 0.0
    %839 = vmatpush1.msra.mxu0 0.0
    %840 = vmatprep.subr.mxu0 0.0
    %841 = vmatpush1.msra.mxu0 0.0
    %842 = vmatprep.subr.mxu0 0.0
    %843 = vmatpush1.msra.mxu0 0.0
    %844 = vmatprep.subr.mxu0 0.0
    %845 = vmatpush1.msra.mxu0 0.0
    %846 = vmatprep.subr.mxu0 0.0
    %847 = vmatpush1.msra.mxu0 0.0
    %848 = vmatprep.subr.mxu0 0.0
    %849 = vmatpush1.msra.mxu0 0.0
    %850 = vmatprep.subr.mxu0 0.0
    %851 = vmatpush1.msra.mxu0 0.0
    %852 = vmatprep.subr.mxu0 0.0
    %853 = vmatpush1.msra.mxu0 0.0
    %854 = vmatprep.subr.mxu0 0.0
    %855 = vmatpush1.msra.mxu0 0.0
    %856 = vmatprep.subr.mxu0 0.0
    %857 = vmatpush1.msra.mxu0 0.0
    %858 = vmatprep.subr.mxu0 0.0
    %859 = vmatpush1.msra.mxu0 0.0
    %860 = vmatprep.subr.mxu0 0.0
    %861 = vmatpush1.msra.mxu0 0.0
    %862 = vmatprep.subr.mxu0 0.0
    %863 = vmatpush1.msra.mxu0 0.0
    %864 = vmatprep.subr.mxu0 0.0
    %865 = vmatpush1.msra.mxu0 0.0
    %866 = vmatprep.subr.mxu0 0.0
    %867 = vmatpush1.msra.mxu0 %v831
    %868 = vmatprep.subr.mxu0 0.0
    %869 = vmatpush2.msra.mxu0 0.0
    %870 = vmatprep.subr.mxu0 0.0
    %871 = vmatpush2.msra.mxu0 0.0
    %872 = vmatprep.subr.mxu0 0.0
    %873 = vmatpush2.msra.mxu0 0.0
    %874 = vmatprep.subr.mxu0 0.0
    %875 = vmatpush2.msra.mxu0 0.0
    %876 = vmatprep.subr.mxu0 0.0
    %877 = vmatpush2.msra.mxu0 0.0
    %878 = vmatprep.subr.mxu0 0.0
    %879 = vmatpush2.msra.mxu0 0.0
    %880 = vmatprep.subr.mxu0 0.0
    %881 = vmatpush2.msra.mxu0 0.0
    %882 = vmatprep.subr.mxu0 0.0
    %883 = vmatpush2.msra.mxu0 0.0
    %884 = vmatprep.subr.mxu0 0.0
    %885 = vmatpush2.msra.mxu0 0.0
    %886 = vmatprep.subr.mxu0 0.0
    %887 = vmatpush2.msra.mxu0 0.0
    %888 = vmatprep.subr.mxu0 0.0
    %889 = vmatpush2.msra.mxu0 0.0
    %890 = vmatprep.subr.mxu0 0.0
    %891 = vmatpush2.msra.mxu0 0.0
    %892 = vmatprep.subr.mxu0 0.0
    %893 = vmatpush2.msra.mxu0 0.0
    %894 = vmatprep.subr.mxu0 0.0
    %895 = vmatpush2.msra.mxu0 0.0
    %896 = vmatprep.subr.mxu0 0.0
    %897 = vmatpush2.msra.mxu0 0.0
    %898 = vmatprep.subr.mxu0 0.0
    %899 = vmatpush2.msra.mxu0 0.0
    %900 = vmatprep.mubr.f32.mxu0 0.0
    %901 = vmatmul.mubr.f32.gmra.mxu0 %v834
    %v902 = vpop.f32.mrf.mxu0
    %v903 = vadd.f32 0.0, %v902
    %v904 = vpop.f32.mrf.mxu0
    %905 = vdwg.mxu0
    %v906 = vrcp.pop %v750
    %v907 = vrcp.pop %v753
    %v908 = vmul.f32 %v827, %v906
    %v909 = vmul.f32 %v903, %v907
    %v911 = vsel %vm171, %v908, 0
    %v914 = vsel %vm171, %v909, 0
    %916 = vmatprep.subr.mxu0 0.0
    %917 = vmatpush1.msra.mxu0 0.0
    %918 = vmatprep.subr.mxu0 0.0
    %919 = vmatpush1.msra.mxu0 0.0
    %920 = vmatprep.subr.mxu0 0.0
    %921 = vmatpush1.msra.mxu0 0.0
    %922 = vmatprep.subr.mxu0 0.0
    %923 = vmatpush1.msra.mxu0 0.0
    %924 = vmatprep.subr.mxu0 0.0
    %925 = vmatpush1.msra.mxu0 0.0
    %926 = vmatprep.subr.mxu0 0.0
    %927 = vmatpush1.msra.mxu0 0.0
    %928 = vmatprep.subr.mxu0 0.0
    %929 = vmatpush1.msra.mxu0 0.0
    %930 = vmatprep.subr.mxu0 0.0
    %931 = vmatpush1.msra.mxu0 0.0
    %932 = vmatprep.subr.mxu0 0.0
    %933 = vmatpush1.msra.mxu0 0.0
    %934 = vmatprep.subr.mxu0 0.0
    %935 = vmatpush1.msra.mxu0 0.0
    %936 = vmatprep.subr.mxu0 0.0
    %937 = vmatpush1.msra.mxu0 0.0
    %938 = vmatprep.subr.mxu0 0.0
    %939 = vmatpush1.msra.mxu0 0.0
    %940 = vmatprep.subr.mxu0 0.0
    %941 = vmatpush1.msra.mxu0 0.0
    %942 = vmatprep.subr.mxu0 0.0
    %943 = vmatpush1.msra.mxu0 0.0
    %944 = vmatprep.subr.mxu0 0.0
    %945 = vmatpush1.msra.mxu0 0.0
    %946 = vmatprep.subr.mxu0 0.0
    %947 = vmatpush1.msra.mxu0 %v158
    %948 = vmatprep.subr.mxu0 0.0
    %949 = vmatpush2.msra.mxu0 0.0
    %950 = vmatprep.subr.mxu0 0.0
    %951 = vmatpush2.msra.mxu0 0.0
    %952 = vmatprep.subr.mxu0 0.0
    %953 = vmatpush2.msra.mxu0 0.0
    %954 = vmatprep.subr.mxu0 0.0
    %955 = vmatpush2.msra.mxu0 0.0
    %956 = vmatprep.subr.mxu0 0.0
    %957 = vmatpush2.msra.mxu0 0.0
    %958 = vmatprep.subr.mxu0 0.0
    %959 = vmatpush2.msra.mxu0 0.0
    %960 = vmatprep.subr.mxu0 0.0
    %961 = vmatpush2.msra.mxu0 0.0
    %962 = vmatprep.subr.mxu0 0.0
    %963 = vmatpush2.msra.mxu0 0.0
    %964 = vmatprep.subr.mxu0 0.0
    %965 = vmatpush2.msra.mxu0 0.0
    %966 = vmatprep.subr.mxu0 0.0
    %967 = vmatpush2.msra.mxu0 0.0
    %968 = vmatprep.subr.mxu0 0.0
    %969 = vmatpush2.msra.mxu0 0.0
    %970 = vmatprep.subr.mxu0 0.0
    %971 = vmatpush2.msra.mxu0 0.0
    %972 = vmatprep.subr.mxu0 0.0
    %973 = vmatpush2.msra.mxu0 0.0
    %974 = vmatprep.subr.mxu0 0.0
    %975 = vmatpush2.msra.mxu0 0.0
    %976 = vmatprep.subr.mxu0 0.0
    %977 = vmatpush2.msra.mxu0 0.0
    %978 = vmatprep.subr.mxu0 0.0
    %979 = vmatpush2.msra.mxu0 0.0
    %980 = vmatprep.mubr.f32.mxu0 0.0
    %981 = vmatmul.mubr.f32.gmra.mxu0 %v911
    %v982 = vpop.f32.mrf.mxu0
    %v983 = vadd.f32 0.0, %v982
    %v984 = vpop.f32.mrf.mxu0
    %985 = vmatprep.mubr.f32.mxu0 0.0
    %986 = vmatmul.mubr.f32.gmra.mxu0 %v914
    %v987 = vpop.f32.mrf.mxu0
    %v988 = vadd.f32 0.0, %v987
    %v989 = vpop.f32.mrf.mxu0
    %990 = vdwg.mxu0
    %v991 = vadd.f32 %v578, %v983
    %v992 = vadd.f32 %v579, %v988
    %993 = vrot.lane.b32.xlu0 %v149, 112
    %v994 = vpop.permute.xlu0 %993
    %995 = vrot.lane.b32.xlu0 %v149, 80
    %v996 = vpop.permute.xlu0 %995
    %v997 = vsel %vm171, %v994, 0
    %v999 = vsel %vm171, %v996, 0
    %1001 = vmatprep.subr.mxu0 0.0
    %1002 = vmatpush1.xpose.msra.mxu0 0.0
    %1003 = vmatprep.subr.mxu0 0.0
    %1004 = vmatpush1.xpose.msra.mxu0 0.0
    %1005 = vmatprep.subr.mxu0 0.0
    %1006 = vmatpush1.xpose.msra.mxu0 0.0
    %1007 = vmatprep.subr.mxu0 0.0
    %1008 = vmatpush1.xpose.msra.mxu0 0.0
    %1009 = vmatprep.subr.mxu0 0.0
    %1010 = vmatpush1.xpose.msra.mxu0 0.0
    %1011 = vmatprep.subr.mxu0 0.0
    %1012 = vmatpush1.xpose.msra.mxu0 0.0
    %1013 = vmatprep.subr.mxu0 0.0
    %1014 = vmatpush1.xpose.msra.mxu0 0.0
    %1015 = vmatprep.subr.mxu0 0.0
    %1016 = vmatpush1.xpose.msra.mxu0 0.0
    %1017 = vmatprep.subr.mxu0 0.0
    %1018 = vmatpush1.xpose.msra.mxu0 0.0
    %1019 = vmatprep.subr.mxu0 0.0
    %1020 = vmatpush1.xpose.msra.mxu0 0.0
    %1021 = vmatprep.subr.mxu0 0.0
    %1022 = vmatpush1.xpose.msra.mxu0 0.0
    %1023 = vmatprep.subr.mxu0 0.0
    %1024 = vmatpush1.xpose.msra.mxu0 0.0
    %1025 = vmatprep.subr.mxu0 0.0
    %1026 = vmatpush1.xpose.msra.mxu0 0.0
    %1027 = vmatprep.subr.mxu0 0.0
    %1028 = vmatpush1.xpose.msra.mxu0 0.0
    %1029 = vmatprep.subr.mxu0 0.0
    %1030 = vmatpush1.xpose.msra.mxu0 0.0
    %1031 = vmatprep.subr.mxu0 0.0
    %1032 = vmatpush1.xpose.msra.mxu0 %v999
    %1033 = vmatprep.subr.mxu0 0.0
    %1034 = vmatpush2.xpose.msra.mxu0 0.0
    %1035 = vmatprep.subr.mxu0 0.0
    %1036 = vmatpush2.xpose.msra.mxu0 0.0
    %1037 = vmatprep.subr.mxu0 0.0
    %1038 = vmatpush2.xpose.msra.mxu0 0.0
    %1039 = vmatprep.subr.mxu0 0.0
    %1040 = vmatpush2.xpose.msra.mxu0 0.0
    %1041 = vmatprep.subr.mxu0 0.0
    %1042 = vmatpush2.xpose.msra.mxu0 0.0
    %1043 = vmatprep.subr.mxu0 0.0
    %1044 = vmatpush2.xpose.msra.mxu0 0.0
    %1045 = vmatprep.subr.mxu0 0.0
    %1046 = vmatpush2.xpose.msra.mxu0 0.0
    %1047 = vmatprep.subr.mxu0 0.0
    %1048 = vmatpush2.xpose.msra.mxu0 0.0
    %1049 = vmatprep.subr.mxu0 0.0
    %1050 = vmatpush2.xpose.msra.mxu0 0.0
    %1051 = vmatprep.subr.mxu0 0.0
    %1052 = vmatpush2.xpose.msra.mxu0 0.0
    %1053 = vmatprep.subr.mxu0 0.0
    %1054 = vmatpush2.xpose.msra.mxu0 0.0
    %1055 = vmatprep.subr.mxu0 0.0
    %1056 = vmatpush2.xpose.msra.mxu0 0.0
    %1057 = vmatprep.subr.mxu0 0.0
    %1058 = vmatpush2.xpose.msra.mxu0 0.0
    %1059 = vmatprep.subr.mxu0 0.0
    %1060 = vmatpush2.xpose.msra.mxu0 0.0
    %1061 = vmatprep.subr.mxu0 0.0
    %1062 = vmatpush2.xpose.msra.mxu0 0.0
    %1063 = vmatprep.subr.mxu0 0.0
    %1064 = vmatpush2.xpose.msra.mxu0 0.0
    %1065 = vmatprep.mubr.f32.mxu0 0.0
    %1066 = vmatmul.mubr.f32.gmra.mxu0 %v997
    %v1067 = vpop.f32.mrf.mxu0
    %v1068 = vadd.f32 0.0, %v1067
    %v1069 = vpop.f32.mrf.mxu0
    %1070 = vdwg.mxu0
    %1071 = vrot.lane.b32.xlu0 %v154, 112
    %v1072 = vpop.permute.xlu0 %1071
    %1073 = vrot.lane.b32.xlu0 %v154, 80
    %v1074 = vpop.permute.xlu0 %1073
    %v1075 = vsel %vm171, %v1072, 0
    %v1077 = vsel %vm171, %v1074, 0
    %1079 = vmatprep.subr.mxu0 0.0
    %1080 = vmatpush1.xpose.msra.mxu0 0.0
    %1081 = vmatprep.subr.mxu0 0.0
    %1082 = vmatpush1.xpose.msra.mxu0 0.0
    %1083 = vmatprep.subr.mxu0 0.0
    %1084 = vmatpush1.xpose.msra.mxu0 0.0
    %1085 = vmatprep.subr.mxu0 0.0
    %1086 = vmatpush1.xpose.msra.mxu0 0.0
    %1087 = vmatprep.subr.mxu0 0.0
    %1088 = vmatpush1.xpose.msra.mxu0 0.0
    %1089 = vmatprep.subr.mxu0 0.0
    %1090 = vmatpush1.xpose.msra.mxu0 0.0
    %1091 = vmatprep.subr.mxu0 0.0
    %1092 = vmatpush1.xpose.msra.mxu0 0.0
    %1093 = vmatprep.subr.mxu0 0.0
    %1094 = vmatpush1.xpose.msra.mxu0 0.0
    %1095 = vmatprep.subr.mxu0 0.0
    %1096 = vmatpush1.xpose.msra.mxu0 0.0
    %1097 = vmatprep.subr.mxu0 0.0
    %1098 = vmatpush1.xpose.msra.mxu0 0.0
    %1099 = vmatprep.subr.mxu0 0.0
    %1100 = vmatpush1.xpose.msra.mxu0 0.0
    %1101 = vmatprep.subr.mxu0 0.0
    %1102 = vmatpush1.xpose.msra.mxu0 0.0
    %1103 = vmatprep.subr.mxu0 0.0
    %1104 = vmatpush1.xpose.msra.mxu0 0.0
    %1105 = vmatprep.subr.mxu0 0.0
    %1106 = vmatpush1.xpose.msra.mxu0 0.0
    %1107 = vmatprep.subr.mxu0 0.0
    %1108 = vmatpush1.xpose.msra.mxu0 0.0
    %1109 = vmatprep.subr.mxu0 0.0
    %1110 = vmatpush1.xpose.msra.mxu0 %v1077
    %1111 = vmatprep.subr.mxu0 0.0
    %1112 = vmatpush2.xpose.msra.mxu0 0.0
    %1113 = vmatprep.subr.mxu0 0.0
    %1114 = vmatpush2.xpose.msra.mxu0 0.0
    %1115 = vmatprep.subr.mxu0 0.0
    %1116 = vmatpush2.xpose.msra.mxu0 0.0
    %1117 = vmatprep.subr.mxu0 0.0
    %1118 = vmatpush2.xpose.msra.mxu0 0.0
    %1119 = vmatprep.subr.mxu0 0.0
    %1120 = vmatpush2.xpose.msra.mxu0 0.0
    %1121 = vmatprep.subr.mxu0 0.0
    %1122 = vmatpush2.xpose.msra.mxu0 0.0
    %1123 = vmatprep.subr.mxu0 0.0
    %1124 = vmatpush2.xpose.msra.mxu0 0.0
    %1125 = vmatprep.subr.mxu0 0.0
    %1126 = vmatpush2.xpose.msra.mxu0 0.0
    %1127 = vmatprep.subr.mxu0 0.0
    %1128 = vmatpush2.xpose.msra.mxu0 0.0
    %1129 = vmatprep.subr.mxu0 0.0
    %1130 = vmatpush2.xpose.msra.mxu0 0.0
    %1131 = vmatprep.subr.mxu0 0.0
    %1132 = vmatpush2.xpose.msra.mxu0 0.0
    %1133 = vmatprep.subr.mxu0 0.0
    %1134 = vmatpush2.xpose.msra.mxu0 0.0
    %1135 = vmatprep.subr.mxu0 0.0
    %1136 = vmatpush2.xpose.msra.mxu0 0.0
    %1137 = vmatprep.subr.mxu0 0.0
    %1138 = vmatpush2.xpose.msra.mxu0 0.0
    %1139 = vmatprep.subr.mxu0 0.0
    %1140 = vmatpush2.xpose.msra.mxu0 0.0
    %1141 = vmatprep.subr.mxu0 0.0
    %1142 = vmatpush2.xpose.msra.mxu0 0.0
    %1143 = vmatprep.mubr.f32.mxu0 0.0
    %1144 = vmatmul.mubr.f32.gmra.mxu0 %v1075
    %v1145 = vpop.f32.mrf.mxu0
    %v1146 = vadd.f32 0.0, %v1145
    %v1147 = vpop.f32.mrf.mxu0
    %1148 = vdwg.mxu0
    %v1149 = vsel %vm171, %v1068, -inf
    %1150 = vmax.xlane.f32.xlu0 %v1149
    %v1151 = vpop.xlane.xlu0 %1150
    %v1152 = vsel %vm171, %v1146, -inf
    %1153 = vmax.xlane.f32.xlu0 %v1152
    %v1154 = vpop.xlane.xlu0 %1153
    %v1155 = vsub.f32 %v1068, %v1151
    %v1156 = vsub.f32 %v1146, %v1154
    %v1157 = vmul.f32 %v1155, 1.442695
    %v1158 = vpow.pop %v1157
    %v1159 = vmul.f32 %v1156, 1.442695
    %v1160 = vpow.pop %v1159
    %v1161 = vsel %vm171, %v1158, 0.0
    %1162 = vadd.xlane.f32.xlu0 %v1161
    %v1163 = vpop.xlane.xlu0 %1162
    %v1164 = vsel %vm171, %v1160, 0.0
    %1165 = vadd.xlane.f32.xlu0 %v1164
    %v1166 = vpop.xlane.xlu0 %1165
    %1167 = vrot.lane.b32.xlu0 %v149, 48
    %v1168 = vpop.permute.xlu0 %1167
    %v1171 = vsel %vm171, %v1158, 0
    %1173 = vmatprep.subr.mxu0 0.0
    %1174 = vmatpush1.msra.mxu0 0.0
    %1175 = vmatprep.subr.mxu0 0.0
    %1176 = vmatpush1.msra.mxu0 0.0
    %1177 = vmatprep.subr.mxu0 0.0
    %1178 = vmatpush1.msra.mxu0 0.0
    %1179 = vmatprep.subr.mxu0 0.0
    %1180 = vmatpush1.msra.mxu0 0.0
    %1181 = vmatprep.subr.mxu0 0.0
    %1182 = vmatpush1.msra.mxu0 0.0
    %1183 = vmatprep.subr.mxu0 0.0
    %1184 = vmatpush1.msra.mxu0 0.0
    %1185 = vmatprep.subr.mxu0 0.0
    %1186 = vmatpush1.msra.mxu0 0.0
    %1187 = vmatprep.subr.mxu0 0.0
    %1188 = vmatpush1.msra.mxu0 0.0
    %1189 = vmatprep.subr.mxu0 0.0
    %1190 = vmatpush1.msra.mxu0 0.0
    %1191 = vmatprep.subr.mxu0 0.0
    %1192 = vmatpush1.msra.mxu0 0.0
    %1193 = vmatprep.subr.mxu0 0.0
    %1194 = vmatpush1.msra.mxu0 0.0
    %1195 = vmatprep.subr.mxu0 0.0
    %1196 = vmatpush1.msra.mxu0 0.0
    %1197 = vmatprep.subr.mxu0 0.0
    %1198 = vmatpush1.msra.mxu0 0.0
    %1199 = vmatprep.subr.mxu0 0.0
    %1200 = vmatpush1.msra.mxu0 0.0
    %1201 = vmatprep.subr.mxu0 0.0
    %1202 = vmatpush1.msra.mxu0 0.0
    %1203 = vmatprep.subr.mxu0 0.0
    %1204 = vmatpush1.msra.mxu0 %v1168
    %1205 = vmatprep.subr.mxu0 0.0
    %1206 = vmatpush2.msra.mxu0 0.0
    %1207 = vmatprep.subr.mxu0 0.0
    %1208 = vmatpush2.msra.mxu0 0.0
    %1209 = vmatprep.subr.mxu0 0.0
    %1210 = vmatpush2.msra.mxu0 0.0
    %1211 = vmatprep.subr.mxu0 0.0
    %1212 = vmatpush2.msra.mxu0 0.0
    %1213 = vmatprep.subr.mxu0 0.0
    %1214 = vmatpush2.msra.mxu0 0.0
    %1215 = vmatprep.subr.mxu0 0.0
    %1216 = vmatpush2.msra.mxu0 0.0
    %1217 = vmatprep.subr.mxu0 0.0
    %1218 = vmatpush2.msra.mxu0 0.0
    %1219 = vmatprep.subr.mxu0 0.0
    %1220 = vmatpush2.msra.mxu0 0.0
    %1221 = vmatprep.subr.mxu0 0.0
    %1222 = vmatpush2.msra.mxu0 0.0
    %1223 = vmatprep.subr.mxu0 0.0
    %1224 = vmatpush2.msra.mxu0 0.0
    %1225 = vmatprep.subr.mxu0 0.0
    %1226 = vmatpush2.msra.mxu0 0.0
    %1227 = vmatprep.subr.mxu0 0.0
    %1228 = vmatpush2.msra.mxu0 0.0
    %1229 = vmatprep.subr.mxu0 0.0
    %1230 = vmatpush2.msra.mxu0 0.0
    %1231 = vmatprep.subr.mxu0 0.0
    %1232 = vmatpush2.msra.mxu0 0.0
    %1233 = vmatprep.subr.mxu0 0.0
    %1234 = vmatpush2.msra.mxu0 0.0
    %1235 = vmatprep.subr.mxu0 0.0
    %1236 = vmatpush2.msra.mxu0 0.0
    %1237 = vmatprep.mubr.f32.mxu0 0.0
    %1238 = vmatmul.mubr.f32.gmra.mxu0 %v1171
    %v1239 = vpop.f32.mrf.mxu0
    %v1240 = vadd.f32 0.0, %v1239
    %v1241 = vpop.f32.mrf.mxu0
    %1242 = vdwg.mxu0
    %1243 = vrot.lane.b32.xlu0 %v154, 48
    %v1244 = vpop.permute.xlu0 %1243
    %v1247 = vsel %vm171, %v1160, 0
    %1249 = vmatprep.subr.mxu0 0.0
    %1250 = vmatpush1.msra.mxu0 0.0
    %1251 = vmatprep.subr.mxu0 0.0
    %1252 = vmatpush1.msra.mxu0 0.0
    %1253 = vmatprep.subr.mxu0 0.0
    %1254 = vmatpush1.msra.mxu0 0.0
    %1255 = vmatprep.subr.mxu0 0.0
    %1256 = vmatpush1.msra.mxu0 0.0
    %1257 = vmatprep.subr.mxu0 0.0
    %1258 = vmatpush1.msra.mxu0 0.0
    %1259 = vmatprep.subr.mxu0 0.0
    %1260 = vmatpush1.msra.mxu0 0.0
    %1261 = vmatprep.subr.mxu0 0.0
    %1262 = vmatpush1.msra.mxu0 0.0
    %1263 = vmatprep.subr.mxu0 0.0
    %1264 = vmatpush1.msra.mxu0 0.0
    %1265 = vmatprep.subr.mxu0 0.0
    %1266 = vmatpush1.msra.mxu0 0.0
    %1267 = vmatprep.subr.mxu0 0.0
    %1268 = vmatpush1.msra.mxu0 0.0
    %1269 = vmatprep.subr.mxu0 0.0
    %1270 = vmatpush1.msra.mxu0 0.0
    %1271 = vmatprep.subr.mxu0 0.0
    %1272 = vmatpush1.msra.mxu0 0.0
    %1273 = vmatprep.subr.mxu0 0.0
    %1274 = vmatpush1.msra.mxu0 0.0
    %1275 = vmatprep.subr.mxu0 0.0
    %1276 = vmatpush1.msra.mxu0 0.0
    %1277 = vmatprep.subr.mxu0 0.0
    %1278 = vmatpush1.msra.mxu0 0.0
    %1279 = vmatprep.subr.mxu0 0.0
    %1280 = vmatpush1.msra.mxu0 %v1244
    %1281 = vmatprep.subr.mxu0 0.0
    %1282 = vmatpush2.msra.mxu0 0.0
    %1283 = vmatprep.subr.mxu0 0.0
    %1284 = vmatpush2.msra.mxu0 0.0
    %1285 = vmatprep.subr.mxu0 0.0
    %1286 = vmatpush2.msra.mxu0 0.0
    %1287 = vmatprep.subr.mxu0 0.0
    %1288 = vmatpush2.msra.mxu0 0.0
    %1289 = vmatprep.subr.mxu0 0.0
    %1290 = vmatpush2.msra.mxu0 0.0
    %1291 = vmatprep.subr.mxu0 0.0
    %1292 = vmatpush2.msra.mxu0 0.0
    %1293 = vmatprep.subr.mxu0 0.0
    %1294 = vmatpush2.msra.mxu0 0.0
    %1295 = vmatprep.subr.mxu0 0.0
    %1296 = vmatpush2.msra.mxu0 0.0
    %1297 = vmatprep.subr.mxu0 0.0
    %1298 = vmatpush2.msra.mxu0 0.0
    %1299 = vmatprep.subr.mxu0 0.0
    %1300 = vmatpush2.msra.mxu0 0.0
    %1301 = vmatprep.subr.mxu0 0.0
    %1302 = vmatpush2.msra.mxu0 0.0
    %1303 = vmatprep.subr.mxu0 0.0
    %1304 = vmatpush2.msra.mxu0 0.0
    %1305 = vmatprep.subr.mxu0 0.0
    %1306 = vmatpush2.msra.mxu0 0.0
    %1307 = vmatprep.subr.mxu0 0.0
    %1308 = vmatpush2.msra.mxu0 0.0
    %1309 = vmatprep.subr.mxu0 0.0
    %1310 = vmatpush2.msra.mxu0 0.0
    %1311 = vmatprep.subr.mxu0 0.0
    %1312 = vmatpush2.msra.mxu0 0.0
    %1313 = vmatprep.mubr.f32.mxu0 0.0
    %1314 = vmatmul.mubr.f32.gmra.mxu0 %v1247
    %v1315 = vpop.f32.mrf.mxu0
    %v1316 = vadd.f32 0.0, %v1315
    %v1317 = vpop.f32.mrf.mxu0
    %1318 = vdwg.mxu0
    %v1319 = vrcp.pop %v1163
    %v1320 = vrcp.pop %v1166
    %v1321 = vmul.f32 %v1240, %v1319
    %v1322 = vmul.f32 %v1316, %v1320
    %v1324 = vsel %vm171, %v1321, 0
    %v1327 = vsel %vm171, %v1322, 0
    %1329 = vmatprep.subr.mxu0 0.0
    %1330 = vmatpush1.msra.mxu0 0.0
    %1331 = vmatprep.subr.mxu0 0.0
    %1332 = vmatpush1.msra.mxu0 0.0
    %1333 = vmatprep.subr.mxu0 0.0
    %1334 = vmatpush1.msra.mxu0 0.0
    %1335 = vmatprep.subr.mxu0 0.0
    %1336 = vmatpush1.msra.mxu0 0.0
    %1337 = vmatprep.subr.mxu0 0.0
    %1338 = vmatpush1.msra.mxu0 0.0
    %1339 = vmatprep.subr.mxu0 0.0
    %1340 = vmatpush1.msra.mxu0 0.0
    %1341 = vmatprep.subr.mxu0 0.0
    %1342 = vmatpush1.msra.mxu0 0.0
    %1343 = vmatprep.subr.mxu0 0.0
    %1344 = vmatpush1.msra.mxu0 0.0
    %1345 = vmatprep.subr.mxu0 0.0
    %1346 = vmatpush1.msra.mxu0 0.0
    %1347 = vmatprep.subr.mxu0 0.0
    %1348 = vmatpush1.msra.mxu0 0.0
    %1349 = vmatprep.subr.mxu0 0.0
    %1350 = vmatpush1.msra.mxu0 0.0
    %1351 = vmatprep.subr.mxu0 0.0
    %1352 = vmatpush1.msra.mxu0 0.0
    %1353 = vmatprep.subr.mxu0 0.0
    %1354 = vmatpush1.msra.mxu0 0.0
    %1355 = vmatprep.subr.mxu0 0.0
    %1356 = vmatpush1.msra.mxu0 0.0
    %1357 = vmatprep.subr.mxu0 0.0
    %1358 = vmatpush1.msra.mxu0 0.0
    %1359 = vmatprep.subr.mxu0 0.0
    %1360 = vmatpush1.msra.mxu0 %v159
    %1361 = vmatprep.subr.mxu0 0.0
    %1362 = vmatpush2.msra.mxu0 0.0
    %1363 = vmatprep.subr.mxu0 0.0
    %1364 = vmatpush2.msra.mxu0 0.0
    %1365 = vmatprep.subr.mxu0 0.0
    %1366 = vmatpush2.msra.mxu0 0.0
    %1367 = vmatprep.subr.mxu0 0.0
    %1368 = vmatpush2.msra.mxu0 0.0
    %1369 = vmatprep.subr.mxu0 0.0
    %1370 = vmatpush2.msra.mxu0 0.0
    %1371 = vmatprep.subr.mxu0 0.0
    %1372 = vmatpush2.msra.mxu0 0.0
    %1373 = vmatprep.subr.mxu0 0.0
    %1374 = vmatpush2.msra.mxu0 0.0
    %1375 = vmatprep.subr.mxu0 0.0
    %1376 = vmatpush2.msra.mxu0 0.0
    %1377 = vmatprep.subr.mxu0 0.0
    %1378 = vmatpush2.msra.mxu0 0.0
    %1379 = vmatprep.subr.mxu0 0.0
    %1380 = vmatpush2.msra.mxu0 0.0
    %1381 = vmatprep.subr.mxu0 0.0
    %1382 = vmatpush2.msra.mxu0 0.0
    %1383 = vmatprep.subr.mxu0 0.0
    %1384 = vmatpush2.msra.mxu0 0.0
    %1385 = vmatprep.subr.mxu0 0.0
    %1386 = vmatpush2.msra.mxu0 0.0
    %1387 = vmatprep.subr.mxu0 0.0
    %1388 = vmatpush2.msra.mxu0 0.0
    %1389 = vmatprep.subr.mxu0 0.0
    %1390 = vmatpush2.msra.mxu0 0.0
    %1391 = vmatprep.subr.mxu0 0.0
    %1392 = vmatpush2.msra.mxu0 0.0
    %1393 = vmatprep.mubr.f32.mxu0 0.0
    %1394 = vmatmul.mubr.f32.gmra.mxu0 %v1324
    %v1395 = vpop.f32.mrf.mxu0
    %v1396 = vadd.f32 0.0, %v1395
    %v1397 = vpop.f32.mrf.mxu0
    %1398 = vmatprep.mubr.f32.mxu0 0.0
    %1399 = vmatmul.mubr.f32.gmra.mxu0 %v1327
    %v1400 = vpop.f32.mrf.mxu0
    %v1401 = vadd.f32 0.0, %v1400
    %v1402 = vpop.f32.mrf.mxu0
    %1403 = vdwg.mxu0
    %v1404 = vadd.f32 %v991, %v1396
    %v1405 = vadd.f32 %v992, %v1401
    %1406 = vrot.lane.b32.xlu0 %v149, 104
    %v1407 = vpop.permute.xlu0 %1406
    %1408 = vrot.lane.b32.xlu0 %v149, 72
    %v1409 = vpop.permute.xlu0 %1408
    %v1410 = vsel %vm171, %v1407, 0
    %v1412 = vsel %vm171, %v1409, 0
    %1414 = vmatprep.subr.mxu0 0.0
    %1415 = vmatpush1.xpose.msra.mxu0 0.0
    %1416 = vmatprep.subr.mxu0 0.0
    %1417 = vmatpush1.xpose.msra.mxu0 0.0
    %1418 = vmatprep.subr.mxu0 0.0
    %1419 = vmatpush1.xpose.msra.mxu0 0.0
    %1420 = vmatprep.subr.mxu0 0.0
    %1421 = vmatpush1.xpose.msra.mxu0 0.0
    %1422 = vmatprep.subr.mxu0 0.0
    %1423 = vmatpush1.xpose.msra.mxu0 0.0
    %1424 = vmatprep.subr.mxu0 0.0
    %1425 = vmatpush1.xpose.msra.mxu0 0.0
    %1426 = vmatprep.subr.mxu0 0.0
    %1427 = vmatpush1.xpose.msra.mxu0 0.0
    %1428 = vmatprep.subr.mxu0 0.0
    %1429 = vmatpush1.xpose.msra.mxu0 0.0
    %1430 = vmatprep.subr.mxu0 0.0
    %1431 = vmatpush1.xpose.msra.mxu0 0.0
    %1432 = vmatprep.subr.mxu0 0.0
    %1433 = vmatpush1.xpose.msra.mxu0 0.0
    %1434 = vmatprep.subr.mxu0 0.0
    %1435 = vmatpush1.xpose.msra.mxu0 0.0
    %1436 = vmatprep.subr.mxu0 0.0
    %1437 = vmatpush1.xpose.msra.mxu0 0.0
    %1438 = vmatprep.subr.mxu0 0.0
    %1439 = vmatpush1.xpose.msra.mxu0 0.0
    %1440 = vmatprep.subr.mxu0 0.0
    %1441 = vmatpush1.xpose.msra.mxu0 0.0
    %1442 = vmatprep.subr.mxu0 0.0
    %1443 = vmatpush1.xpose.msra.mxu0 0.0
    %1444 = vmatprep.subr.mxu0 0.0
    %1445 = vmatpush1.xpose.msra.mxu0 %v1412
    %1446 = vmatprep.subr.mxu0 0.0
    %1447 = vmatpush2.xpose.msra.mxu0 0.0
    %1448 = vmatprep.subr.mxu0 0.0
    %1449 = vmatpush2.xpose.msra.mxu0 0.0
    %1450 = vmatprep.subr.mxu0 0.0
    %1451 = vmatpush2.xpose.msra.mxu0 0.0
    %1452 = vmatprep.subr.mxu0 0.0
    %1453 = vmatpush2.xpose.msra.mxu0 0.0
    %1454 = vmatprep.subr.mxu0 0.0
    %1455 = vmatpush2.xpose.msra.mxu0 0.0
    %1456 = vmatprep.subr.mxu0 0.0
    %1457 = vmatpush2.xpose.msra.mxu0 0.0
    %1458 = vmatprep.subr.mxu0 0.0
    %1459 = vmatpush2.xpose.msra.mxu0 0.0
    %1460 = vmatprep.subr.mxu0 0.0
    %1461 = vmatpush2.xpose.msra.mxu0 0.0
    %1462 = vmatprep.subr.mxu0 0.0
    %1463 = vmatpush2.xpose.msra.mxu0 0.0
    %1464 = vmatprep.subr.mxu0 0.0
    %1465 = vmatpush2.xpose.msra.mxu0 0.0
    %1466 = vmatprep.subr.mxu0 0.0
    %1467 = vmatpush2.xpose.msra.mxu0 0.0
    %1468 = vmatprep.subr.mxu0 0.0
    %1469 = vmatpush2.xpose.msra.mxu0 0.0
    %1470 = vmatprep.subr.mxu0 0.0
    %1471 = vmatpush2.xpose.msra.mxu0 0.0
    %1472 = vmatprep.subr.mxu0 0.0
    %1473 = vmatpush2.xpose.msra.mxu0 0.0
    %1474 = vmatprep.subr.mxu0 0.0
    %1475 = vmatpush2.xpose.msra.mxu0 0.0
    %1476 = vmatprep.subr.mxu0 0.0
    %1477 = vmatpush2.xpose.msra.mxu0 0.0
    %1478 = vmatprep.mubr.f32.mxu0 0.0
    %1479 = vmatmul.mubr.f32.gmra.mxu0 %v1410
    %v1480 = vpop.f32.mrf.mxu0
    %v1481 = vadd.f32 0.0, %v1480
    %v1482 = vpop.f32.mrf.mxu0
    %1483 = vdwg.mxu0
    %1484 = vrot.lane.b32.xlu0 %v154, 104
    %v1485 = vpop.permute.xlu0 %1484
    %1486 = vrot.lane.b32.xlu0 %v154, 72
    %v1487 = vpop.permute.xlu0 %1486
    %v1488 = vsel %vm171, %v1485, 0
    %v1490 = vsel %vm171, %v1487, 0
    %1492 = vmatprep.subr.mxu0 0.0
    %1493 = vmatpush1.xpose.msra.mxu0 0.0
    %1494 = vmatprep.subr.mxu0 0.0
    %1495 = vmatpush1.xpose.msra.mxu0 0.0
    %1496 = vmatprep.subr.mxu0 0.0
    %1497 = vmatpush1.xpose.msra.mxu0 0.0
    %1498 = vmatprep.subr.mxu0 0.0
    %1499 = vmatpush1.xpose.msra.mxu0 0.0
    %1500 = vmatprep.subr.mxu0 0.0
    %1501 = vmatpush1.xpose.msra.mxu0 0.0
    %1502 = vmatprep.subr.mxu0 0.0
    %1503 = vmatpush1.xpose.msra.mxu0 0.0
    %1504 = vmatprep.subr.mxu0 0.0
    %1505 = vmatpush1.xpose.msra.mxu0 0.0
    %1506 = vmatprep.subr.mxu0 0.0
    %1507 = vmatpush1.xpose.msra.mxu0 0.0
    %1508 = vmatprep.subr.mxu0 0.0
    %1509 = vmatpush1.xpose.msra.mxu0 0.0
    %1510 = vmatprep.subr.mxu0 0.0
    %1511 = vmatpush1.xpose.msra.mxu0 0.0
    %1512 = vmatprep.subr.mxu0 0.0
    %1513 = vmatpush1.xpose.msra.mxu0 0.0
    %1514 = vmatprep.subr.mxu0 0.0
    %1515 = vmatpush1.xpose.msra.mxu0 0.0
    %1516 = vmatprep.subr.mxu0 0.0
    %1517 = vmatpush1.xpose.msra.mxu0 0.0
    %1518 = vmatprep.subr.mxu0 0.0
    %1519 = vmatpush1.xpose.msra.mxu0 0.0
    %1520 = vmatprep.subr.mxu0 0.0
    %1521 = vmatpush1.xpose.msra.mxu0 0.0
    %1522 = vmatprep.subr.mxu0 0.0
    %1523 = vmatpush1.xpose.msra.mxu0 %v1490
    %1524 = vmatprep.subr.mxu0 0.0
    %1525 = vmatpush2.xpose.msra.mxu0 0.0
    %1526 = vmatprep.subr.mxu0 0.0
    %1527 = vmatpush2.xpose.msra.mxu0 0.0
    %1528 = vmatprep.subr.mxu0 0.0
    %1529 = vmatpush2.xpose.msra.mxu0 0.0
    %1530 = vmatprep.subr.mxu0 0.0
    %1531 = vmatpush2.xpose.msra.mxu0 0.0
    %1532 = vmatprep.subr.mxu0 0.0
    %1533 = vmatpush2.xpose.msra.mxu0 0.0
    %1534 = vmatprep.subr.mxu0 0.0
    %1535 = vmatpush2.xpose.msra.mxu0 0.0
    %1536 = vmatprep.subr.mxu0 0.0
    %1537 = vmatpush2.xpose.msra.mxu0 0.0
    %1538 = vmatprep.subr.mxu0 0.0
    %1539 = vmatpush2.xpose.msra.mxu0 0.0
    %1540 = vmatprep.subr.mxu0 0.0
    %1541 = vmatpush2.xpose.msra.mxu0 0.0
    %1542 = vmatprep.subr.mxu0 0.0
    %1543 = vmatpush2.xpose.msra.mxu0 0.0
    %1544 = vmatprep.subr.mxu0 0.0
    %1545 = vmatpush2.xpose.msra.mxu0 0.0
    %1546 = vmatprep.subr.mxu0 0.0
    %1547 = vmatpush2.xpose.msra.mxu0 0.0
    %1548 = vmatprep.subr.mxu0 0.0
    %1549 = vmatpush2.xpose.msra.mxu0 0.0
    %1550 = vmatprep.subr.mxu0 0.0
    %1551 = vmatpush2.xpose.msra.mxu0 0.0
    %1552 = vmatprep.subr.mxu0 0.0
    %1553 = vmatpush2.xpose.msra.mxu0 0.0
    %1554 = vmatprep.subr.mxu0 0.0
    %1555 = vmatpush2.xpose.msra.mxu0 0.0
    %1556 = vmatprep.mubr.f32.mxu0 0.0
    %1557 = vmatmul.mubr.f32.gmra.mxu0 %v1488
    %v1558 = vpop.f32.mrf.mxu0
    %v1559 = vadd.f32 0.0, %v1558
    %v1560 = vpop.f32.mrf.mxu0
    %1561 = vdwg.mxu0
    %v1562 = vsel %vm171, %v1481, -inf
    %1563 = vmax.xlane.f32.xlu0 %v1562
    %v1564 = vpop.xlane.xlu0 %1563
    %v1565 = vsel %vm171, %v1559, -inf
    %1566 = vmax.xlane.f32.xlu0 %v1565
    %v1567 = vpop.xlane.xlu0 %1566
    %v1568 = vsub.f32 %v1481, %v1564
    %v1569 = vsub.f32 %v1559, %v1567
    %v1570 = vmul.f32 %v1568, 1.442695
    %v1571 = vpow.pop %v1570
    %v1572 = vmul.f32 %v1569, 1.442695
    %v1573 = vpow.pop %v1572
    %v1574 = vsel %vm171, %v1571, 0.0
    %1575 = vadd.xlane.f32.xlu0 %v1574
    %v1576 = vpop.xlane.xlu0 %1575
    %v1577 = vsel %vm171, %v1573, 0.0
    %1578 = vadd.xlane.f32.xlu0 %v1577
    %v1579 = vpop.xlane.xlu0 %1578
    %1580 = vrot.lane.b32.xlu0 %v149, 40
    %v1581 = vpop.permute.xlu0 %1580
    %v1584 = vsel %vm171, %v1571, 0
    %1586 = vmatprep.subr.mxu0 0.0
    %1587 = vmatpush1.msra.mxu0 0.0
    %1588 = vmatprep.subr.mxu0 0.0
    %1589 = vmatpush1.msra.mxu0 0.0
    %1590 = vmatprep.subr.mxu0 0.0
    %1591 = vmatpush1.msra.mxu0 0.0
    %1592 = vmatprep.subr.mxu0 0.0
    %1593 = vmatpush1.msra.mxu0 0.0
    %1594 = vmatprep.subr.mxu0 0.0
    %1595 = vmatpush1.msra.mxu0 0.0
    %1596 = vmatprep.subr.mxu0 0.0
    %1597 = vmatpush1.msra.mxu0 0.0
    %1598 = vmatprep.subr.mxu0 0.0
    %1599 = vmatpush1.msra.mxu0 0.0
    %1600 = vmatprep.subr.mxu0 0.0
    %1601 = vmatpush1.msra.mxu0 0.0
    %1602 = vmatprep.subr.mxu0 0.0
    %1603 = vmatpush1.msra.mxu0 0.0
    %1604 = vmatprep.subr.mxu0 0.0
    %1605 = vmatpush1.msra.mxu0 0.0
    %1606 = vmatprep.subr.mxu0 0.0
    %1607 = vmatpush1.msra.mxu0 0.0
    %1608 = vmatprep.subr.mxu0 0.0
    %1609 = vmatpush1.msra.mxu0 0.0
    %1610 = vmatprep.subr.mxu0 0.0
    %1611 = vmatpush1.msra.mxu0 0.0
    %1612 = vmatprep.subr.mxu0 0.0
    %1613 = vmatpush1.msra.mxu0 0.0
    %1614 = vmatprep.subr.mxu0 0.0
    %1615 = vmatpush1.msra.mxu0 0.0
    %1616 = vmatprep.subr.mxu0 0.0
    %1617 = vmatpush1.msra.mxu0 %v1581
    %1618 = vmatprep.subr.mxu0 0.0
    %1619 = vmatpush2.msra.mxu0 0.0
    %1620 = vmatprep.subr.mxu0 0.0
    %1621 = vmatpush2.msra.mxu0 0.0
    %1622 = vmatprep.subr.mxu0 0.0
    %1623 = vmatpush2.msra.mxu0 0.0
    %1624 = vmatprep.subr.mxu0 0.0
    %1625 = vmatpush2.msra.mxu0 0.0
    %1626 = vmatprep.subr.mxu0 0.0
    %1627 = vmatpush2.msra.mxu0 0.0
    %1628 = vmatprep.subr.mxu0 0.0
    %1629 = vmatpush2.msra.mxu0 0.0
    %1630 = vmatprep.subr.mxu0 0.0
    %1631 = vmatpush2.msra.mxu0 0.0
    %1632 = vmatprep.subr.mxu0 0.0
    %1633 = vmatpush2.msra.mxu0 0.0
    %1634 = vmatprep.subr.mxu0 0.0
    %1635 = vmatpush2.msra.mxu0 0.0
    %1636 = vmatprep.subr.mxu0 0.0
    %1637 = vmatpush2.msra.mxu0 0.0
    %1638 = vmatprep.subr.mxu0 0.0
    %1639 = vmatpush2.msra.mxu0 0.0
    %1640 = vmatprep.subr.mxu0 0.0
    %1641 = vmatpush2.msra.mxu0 0.0
    %1642 = vmatprep.subr.mxu0 0.0
    %1643 = vmatpush2.msra.mxu0 0.0
    %1644 = vmatprep.subr.mxu0 0.0
    %1645 = vmatpush2.msra.mxu0 0.0
    %1646 = vmatprep.subr.mxu0 0.0
    %1647 = vmatpush2.msra.mxu0 0.0
    %1648 = vmatprep.subr.mxu0 0.0
    %1649 = vmatpush2.msra.mxu0 0.0
    %1650 = vmatprep.mubr.f32.mxu0 0.0
    %1651 = vmatmul.mubr.f32.gmra.mxu0 %v1584
    %v1652 = vpop.f32.mrf.mxu0
    %v1653 = vadd.f32 0.0, %v1652
    %v1654 = vpop.f32.mrf.mxu0
    %1655 = vdwg.mxu0
    %1656 = vrot.lane.b32.xlu0 %v154, 40
    %v1657 = vpop.permute.xlu0 %1656
    %v1660 = vsel %vm171, %v1573, 0
    %1662 = vmatprep.subr.mxu0 0.0
    %1663 = vmatpush1.msra.mxu0 0.0
    %1664 = vmatprep.subr.mxu0 0.0
    %1665 = vmatpush1.msra.mxu0 0.0
    %1666 = vmatprep.subr.mxu0 0.0
    %1667 = vmatpush1.msra.mxu0 0.0
    %1668 = vmatprep.subr.mxu0 0.0
    %1669 = vmatpush1.msra.mxu0 0.0
    %1670 = vmatprep.subr.mxu0 0.0
    %1671 = vmatpush1.msra.mxu0 0.0
    %1672 = vmatprep.subr.mxu0 0.0
    %1673 = vmatpush1.msra.mxu0 0.0
    %1674 = vmatprep.subr.mxu0 0.0
    %1675 = vmatpush1.msra.mxu0 0.0
    %1676 = vmatprep.subr.mxu0 0.0
    %1677 = vmatpush1.msra.mxu0 0.0
    %1678 = vmatprep.subr.mxu0 0.0
    %1679 = vmatpush1.msra.mxu0 0.0
    %1680 = vmatprep.subr.mxu0 0.0
    %1681 = vmatpush1.msra.mxu0 0.0
    %1682 = vmatprep.subr.mxu0 0.0
    %1683 = vmatpush1.msra.mxu0 0.0
    %1684 = vmatprep.subr.mxu0 0.0
    %1685 = vmatpush1.msra.mxu0 0.0
    %1686 = vmatprep.subr.mxu0 0.0
    %1687 = vmatpush1.msra.mxu0 0.0
    %1688 = vmatprep.subr.mxu0 0.0
    %1689 = vmatpush1.msra.mxu0 0.0
    %1690 = vmatprep.subr.mxu0 0.0
    %1691 = vmatpush1.msra.mxu0 0.0
    %1692 = vmatprep.subr.mxu0 0.0
    %1693 = vmatpush1.msra.mxu0 %v1657
    %1694 = vmatprep.subr.mxu0 0.0
    %1695 = vmatpush2.msra.mxu0 0.0
    %1696 = vmatprep.subr.mxu0 0.0
    %1697 = vmatpush2.msra.mxu0 0.0
    %1698 = vmatprep.subr.mxu0 0.0
    %1699 = vmatpush2.msra.mxu0 0.0
    %1700 = vmatprep.subr.mxu0 0.0
    %1701 = vmatpush2.msra.mxu0 0.0
    %1702 = vmatprep.subr.mxu0 0.0
    %1703 = vmatpush2.msra.mxu0 0.0
    %1704 = vmatprep.subr.mxu0 0.0
    %1705 = vmatpush2.msra.mxu0 0.0
    %1706 = vmatprep.subr.mxu0 0.0
    %1707 = vmatpush2.msra.mxu0 0.0
    %1708 = vmatprep.subr.mxu0 0.0
    %1709 = vmatpush2.msra.mxu0 0.0
    %1710 = vmatprep.subr.mxu0 0.0
    %1711 = vmatpush2.msra.mxu0 0.0
    %1712 = vmatprep.subr.mxu0 0.0
    %1713 = vmatpush2.msra.mxu0 0.0
    %1714 = vmatprep.subr.mxu0 0.0
    %1715 = vmatpush2.msra.mxu0 0.0
    %1716 = vmatprep.subr.mxu0 0.0
    %1717 = vmatpush2.msra.mxu0 0.0
    %1718 = vmatprep.subr.mxu0 0.0
    %1719 = vmatpush2.msra.mxu0 0.0
    %1720 = vmatprep.subr.mxu0 0.0
    %1721 = vmatpush2.msra.mxu0 0.0
    %1722 = vmatprep.subr.mxu0 0.0
    %1723 = vmatpush2.msra.mxu0 0.0
    %1724 = vmatprep.subr.mxu0 0.0
    %1725 = vmatpush2.msra.mxu0 0.0
    %1726 = vmatprep.mubr.f32.mxu0 0.0
    %1727 = vmatmul.mubr.f32.gmra.mxu0 %v1660
    %v1728 = vpop.f32.mrf.mxu0
    %v1729 = vadd.f32 0.0, %v1728
    %v1730 = vpop.f32.mrf.mxu0
    %1731 = vdwg.mxu0
    %v1732 = vrcp.pop %v1576
    %v1733 = vrcp.pop %v1579
    %v1734 = vmul.f32 %v1653, %v1732
    %v1735 = vmul.f32 %v1729, %v1733
    %v1737 = vsel %vm171, %v1734, 0
    %v1740 = vsel %vm171, %v1735, 0
    %1742 = vmatprep.subr.mxu0 0.0
    %1743 = vmatpush1.msra.mxu0 0.0
    %1744 = vmatprep.subr.mxu0 0.0
    %1745 = vmatpush1.msra.mxu0 0.0
    %1746 = vmatprep.subr.mxu0 0.0
    %1747 = vmatpush1.msra.mxu0 0.0
    %1748 = vmatprep.subr.mxu0 0.0
    %1749 = vmatpush1.msra.mxu0 0.0
    %1750 = vmatprep.subr.mxu0 0.0
    %1751 = vmatpush1.msra.mxu0 0.0
    %1752 = vmatprep.subr.mxu0 0.0
    %1753 = vmatpush1.msra.mxu0 0.0
    %1754 = vmatprep.subr.mxu0 0.0
    %1755 = vmatpush1.msra.mxu0 0.0
    %1756 = vmatprep.subr.mxu0 0.0
    %1757 = vmatpush1.msra.mxu0 0.0
    %1758 = vmatprep.subr.mxu0 0.0
    %1759 = vmatpush1.msra.mxu0 0.0
    %1760 = vmatprep.subr.mxu0 0.0
    %1761 = vmatpush1.msra.mxu0 0.0
    %1762 = vmatprep.subr.mxu0 0.0
    %1763 = vmatpush1.msra.mxu0 0.0
    %1764 = vmatprep.subr.mxu0 0.0
    %1765 = vmatpush1.msra.mxu0 0.0
    %1766 = vmatprep.subr.mxu0 0.0
    %1767 = vmatpush1.msra.mxu0 0.0
    %1768 = vmatprep.subr.mxu0 0.0
    %1769 = vmatpush1.msra.mxu0 0.0
    %1770 = vmatprep.subr.mxu0 0.0
    %1771 = vmatpush1.msra.mxu0 0.0
    %1772 = vmatprep.subr.mxu0 0.0
    %1773 = vmatpush1.msra.mxu0 %v160
    %1774 = vmatprep.subr.mxu0 0.0
    %1775 = vmatpush2.msra.mxu0 0.0
    %1776 = vmatprep.subr.mxu0 0.0
    %1777 = vmatpush2.msra.mxu0 0.0
    %1778 = vmatprep.subr.mxu0 0.0
    %1779 = vmatpush2.msra.mxu0 0.0
    %1780 = vmatprep.subr.mxu0 0.0
    %1781 = vmatpush2.msra.mxu0 0.0
    %1782 = vmatprep.subr.mxu0 0.0
    %1783 = vmatpush2.msra.mxu0 0.0
    %1784 = vmatprep.subr.mxu0 0.0
    %1785 = vmatpush2.msra.mxu0 0.0
    %1786 = vmatprep.subr.mxu0 0.0
    %1787 = vmatpush2.msra.mxu0 0.0
    %1788 = vmatprep.subr.mxu0 0.0
    %1789 = vmatpush2.msra.mxu0 0.0
    %1790 = vmatprep.subr.mxu0 0.0
    %1791 = vmatpush2.msra.mxu0 0.0
    %1792 = vmatprep.subr.mxu0 0.0
    %1793 = vmatpush2.msra.mxu0 0.0
    %1794 = vmatprep.subr.mxu0 0.0
    %1795 = vmatpush2.msra.mxu0 0.0
    %1796 = vmatprep.subr.mxu0 0.0
    %1797 = vmatpush2.msra.mxu0 0.0
    %1798 = vmatprep.subr.mxu0 0.0
    %1799 = vmatpush2.msra.mxu0 0.0
    %1800 = vmatprep.subr.mxu0 0.0
    %1801 = vmatpush2.msra.mxu0 0.0
    %1802 = vmatprep.subr.mxu0 0.0
    %1803 = vmatpush2.msra.mxu0 0.0
    %1804 = vmatprep.subr.mxu0 0.0
    %1805 = vmatpush2.msra.mxu0 0.0
    %1806 = vmatprep.mubr.f32.mxu0 0.0
    %1807 = vmatmul.mubr.f32.gmra.mxu0 %v1737
    %v1808 = vpop.f32.mrf.mxu0
    %v1809 = vadd.f32 0.0, %v1808
    %v1810 = vpop.f32.mrf.mxu0
    %1811 = vmatprep.mubr.f32.mxu0 0.0
    %1812 = vmatmul.mubr.f32.gmra.mxu0 %v1740
    %v1813 = vpop.f32.mrf.mxu0
    %v1814 = vadd.f32 0.0, %v1813
    %v1815 = vpop.f32.mrf.mxu0
    %1816 = vdwg.mxu0
    %v1817 = vadd.f32 %v1404, %v1809
    %v1818 = vadd.f32 %v1405, %v1814
    %1819 = vst.msk [vmem:[#allocation8] sm:$0xff] %vm75, %v1817
    %1820 = vst.msk [vmem:[#allocation8 + $0x8] sm:$0xff] %vm75, %v1818
    // Predicated region
    $region34: #{tpu_custom_call.1} parent=1 // pred_check
      _
    $region35: #{tpu_custom_call.1} parent=1 // pred_check_branch
      %1822 = sbr.rel (0) target = $region37
    $region36: #{tpu_custom_call.1} parent=1 // pred_region
      %s1824 = ssub.s32 256, 256
      %1825 = vsyncadd [#allocation4], %s1824
      %s1826 = sshll.u32 [#allocation8], 4
      %s1827 = int_to_ptr.vmem [resolvable:$true] %s1826
      %1832 = dma.vmem_to_hbm [thread:$0]  %s1827, 256, %s5, [#allocation4], 128, 128, 8
    $region37: #{tpu_custom_call.1} parent=1 // pred_fallthru
      _
    // Predicated region
    $region38: #{tpu_custom_call.1} parent=1 // pred_check
      _
    $region39: #{tpu_custom_call.1} parent=1 // pred_check_branch
      %1834 = sbr.rel (0) target = $region41
    $region40: #{tpu_custom_call.1} parent=1 // pred_region
      %1835 = dma.done [#allocation4], 256
    $region41: #{tpu_custom_call.1} parent=1 // pred_fallthru
      _
    %1836 = vsyncpa [#allocation3], 1
    %1837 = vsyncpa [#allocation6], 1
    %1838 = vsyncpa [#allocation4], 1

</llo_original>
